<compile_context>
chip_gen: v6e
topology: v6e:2x2x1
jax: 0.10.0
libtpu: 0.0.40
codegen_flags: <defaults>
</compile_context>

<pallas_src>
import functools
import math

import jax
import jax.numpy as jnp
from jax.experimental import pallas as pl
from jax.experimental.pallas import tpu as pltpu


def _round_up(n, m):
    return ((n + m - 1) // m) * m


def _layer_norm(x, w, b, eps=1e-5):
    mu = jnp.mean(x, axis=-1, keepdims=True)
    var = jnp.mean((x - mu) ** 2, axis=-1, keepdims=True)
    return (x - mu) * jax.lax.rsqrt(var + eps) * w + b


def _make_kernel(Bblk, S, E, n_heads):
    Dh = E // n_heads
    scale = 1.0 / math.sqrt(Dh)
    R = Bblk * S  # token rows handled per grid point

    def kernel(src_ref, pe_ref,
               in_w_ref, in_b_ref, out_w_ref, out_b_ref,
               ln1_w_ref, ln1_b_ref, w1_ref, b1_ref, w2_ref, b2_ref,
               ln2_w_ref, ln2_b_ref, fc_w_ref, fc_b_ref,
               o_ref, x_ref):
        l = pl.program_id(1)

        # ---- layer 0: add positional encoding into the persistent activation ----
        # TODO(synk): dropout (p=0.5 / p=0.1) omitted — identity (eval mode).
        @pl.when(l == 0)
        def _():
            pe = pe_ref[...]
            if Bblk > 1:
                pe = jnp.concatenate([pe] * Bblk, axis=0)
            x_ref[...] = src_ref[...] + pe

        x = x_ref[...]                                      # (R, E) f32
        x_bf = x.astype(jnp.bfloat16)

        # ---- multi-head self attention: fused QKV projection ----
        qkv = jnp.dot(x_bf, in_w_ref[...],
                      preferred_element_type=jnp.float32) + in_b_ref[...]   # (R, 3E)
        q = qkv[:, 0 * E:1 * E].reshape(Bblk, S, E)
        k = qkv[:, 1 * E:2 * E].reshape(Bblk, S, E)
        v = qkv[:, 2 * E:3 * E].reshape(Bblk, S, E)

        heads = []
        for h in range(n_heads):                            # static unroll over heads
            c0 = h * Dh
            qh = q[:, :, c0:c0 + Dh].astype(jnp.bfloat16)   # (Bblk, S, Dh)
            kh = k[:, :, c0:c0 + Dh].astype(jnp.bfloat16)
            vh = v[:, :, c0:c0 + Dh].astype(jnp.bfloat16)
            s = jax.lax.dot_general(
                qh, kh, (((2,), (2,)), ((0,), (0,))),
                preferred_element_type=jnp.float32) * scale                # (Bblk, S, S)
            s = s - jnp.max(s, axis=-1, keepdims=True)
            p = jnp.exp(s)
            p = p * pl.reciprocal(jnp.sum(p, axis=-1, keepdims=True), approx=True)
            heads.append(jax.lax.dot_general(
                p.astype(jnp.bfloat16), vh, (((2,), (1,)), ((0,), (0,))),
                preferred_element_type=jnp.float32))                       # (Bblk, S, Dh)
        attn = jnp.concatenate(heads, axis=-1).reshape(R, E)
        attn = jnp.dot(attn.astype(jnp.bfloat16), out_w_ref[...],
                       preferred_element_type=jnp.float32) + out_b_ref[...]

        # residual + post-norm 1
        x = _layer_norm(x + attn, ln1_w_ref[...], ln1_b_ref[...])

        # ---- feed-forward (Linear -> ReLU -> Linear), hidden dim lane-padded ----
        ff = jnp.dot(x.astype(jnp.bfloat16), w1_ref[...],
                     preferred_element_type=jnp.float32) + b1_ref[...]
        ff = jnp.maximum(ff, 0.0)
        ff = jnp.dot(ff.astype(jnp.bfloat16), w2_ref[...],
                     preferred_element_type=jnp.float32) + b2_ref[...]

        # residual + post-norm 2
        x = _layer_norm(x + ff, ln2_w_ref[...], ln2_b_ref[...])
        x_ref[...] = x

        # ---- final fc, only after the last encoder layer (lane-dense output) ----
        @pl.when(l == pl.num_programs(1) - 1)
        def _():
            o_ref[...] = jnp.dot(x.astype(jnp.bfloat16), fc_w_ref[...],
                                 preferred_element_type=jnp.float32) + fc_b_ref[...]

    return kernel


@functools.partial(jax.jit, static_argnames=("n_heads", "n_layers", "batch_block"))
def transformer_forward(src, params, *, n_heads, n_layers, batch_block=1):
    S, B, E = src.shape
    L = n_layers
    O = params["fc_w"].shape[-1]
    Hff = params["w1"].shape[-1]

    assert B % batch_block == 0
    nb = B // batch_block
    R = batch_block * S

    # lane-dense padding (exact: zero weights/bias contribute nothing)
    Hp = _round_up(Hff, 128)
    Op = _round_up(O, 128)

    bf16, f32 = jnp.bfloat16, jnp.float32
    in_w = params["in_w"].astype(bf16)                                     # (L, E, 3E)
    out_w = params["out_w"].astype(bf16)                                   # (L, E, E)
    w1 = jnp.pad(params["w1"], ((0, 0), (0, 0), (0, Hp - Hff))).astype(bf16)
    b1 = jnp.pad(params["b1"], ((0, 0), (0, 0), (0, Hp - Hff))).astype(f32)
    w2 = jnp.pad(params["w2"], ((0, 0), (0, Hp - Hff), (0, 0))).astype(bf16)
    fc_w = jnp.pad(params["fc_w"], ((0, 0), (0, Op - O))).astype(bf16)
    fc_b = jnp.pad(params["fc_b"], ((0, 0), (0, Op - O))).astype(f32)

    # PyTorch (S, B, E) -> batch-major flat tokens (B*S, E)
    x2 = jnp.transpose(src, (1, 0, 2)).reshape(B * S, E).astype(f32)
    pe = params["pe"][:S].astype(f32)                                      # (S, E)

    kernel = _make_kernel(batch_block, S, E, n_heads)

    per_layer = lambda b, l: (l, 0, 0)
    const2 = lambda b, l: (0, 0)

    in_specs = [
        pl.BlockSpec((R, E), lambda b, l: (b, 0)),          # src tokens (per batch block)
        pl.BlockSpec((S, E), const2),                       # positional encoding
        pl.BlockSpec((None, E, 3 * E), per_layer),          # in_w   (QKV, fused)
        pl.BlockSpec((None, 1, 3 * E), per_layer),          # in_b
        pl.BlockSpec((None, E, E), per_layer),              # out_w
        pl.BlockSpec((None, 1, E), per_layer),              # out_b
        pl.BlockSpec((None, 1, E), per_layer),              # ln1_w
        pl.BlockSpec((None, 1, E), per_layer),              # ln1_b
        pl.BlockSpec((None, E, Hp), per_layer),             # w1
        pl.BlockSpec((None, 1, Hp), per_layer),             # b1
        pl.BlockSpec((None, Hp, E), per_layer),             # w2
        pl.BlockSpec((None, 1, E), per_layer),               # b2
        pl.BlockSpec((None, 1, E), per_layer),                # ln2_w
        pl.BlockSpec((None, 1, E), per_layer),                # ln2_b
        pl.BlockSpec((E, Op), const2),                        # fc_w
        pl.BlockSpec((1, Op), const2),                        # fc_b
    ]
    out_spec = pl.BlockSpec((R, Op), lambda b, l: (b, 0))

    # VMEM budget: ~85% of physical, capped at 100 MiB (v5e/v6e: ~100 MiB, v7x: ~54 MiB)
    try:
        phys = int(pltpu.get_tpu_info().vmem_capacity_bytes)
    except Exception:
        phys = 64 * 1024 * 1024
    vmem_limit = int(min(phys * 0.85, 100 * 1024 * 1024))

    out2 = pl.pallas_call(
        kernel,
        grid=(nb, L),
        in_specs=in_specs,
        out_specs=out_spec,
        out_shape=jax.ShapeDtypeStruct((B * S, Op), f32),
        scratch_shapes=[pltpu.VMEM((R, E), f32)],            # persistent activation x
        compiler_params=pltpu.CompilerParams(
            dimension_semantics=("parallel", "arbitrary"),
            vmem_limit_bytes=vmem_limit,
        ),
    )(x2, pe,
      in_w, params["in_b"], out_w, params["out_b"],
      params["ln1_w"], params["ln1_b"], w1, b1, w2, params["b2"],
      params["ln2_w"], params["ln2_b"], fc_w, fc_b)

    out2 = out2[:, :O]
    return jnp.transpose(out2.reshape(B, S, O), (1, 0, 2))                 # (S, B, O)


def init_params(key, input_dim, output_dim, hidden_dim, num_layers, max_len=5000):
    E, Hff, L, O = input_dim, hidden_dim, num_layers, output_dim
    ks = jax.random.split(key, 10)

    def nrm(k, shape, scale):
        return jax.random.normal(k, shape, jnp.float32) * scale

    params = dict(
        # all weight matrices stored pre-transposed for "x @ W" inside the kernel
        in_w=nrm(ks[0], (L, E, 3 * E), 1.0 / math.sqrt(E)),
        in_b=nrm(ks[1], (L, 1, 3 * E), 0.02),
        out_w=nrm(ks[2], (L, E, E), 1.0 / math.sqrt(E)),
        out_b=nrm(ks[3], (L, 1, E), 0.02),
        ln1_w=jnp.ones((L, 1, E), jnp.float32),
        ln1_b=jnp.zeros((L, 1, E), jnp.float32),
        w1=nrm(ks[4], (L, E, Hff), 1.0 / math.sqrt(E)),
        b1=nrm(ks[5], (L, 1, Hff), 0.02),
        w2=nrm(ks[6], (L, Hff, E), 1.0 / math.sqrt(Hff)),
        b2=nrm(ks[7], (L, 1, E), 0.02),
        ln2_w=jnp.ones((L, 1, E), jnp.float32),
        ln2_b=jnp.zeros((L, 1, E), jnp.float32),
        fc_w=nrm(ks[8], (E, O), 1.0 / math.sqrt(E)),
        fc_b=nrm(ks[9], (1, O), 0.02),
    )

    # sinusoidal positional-encoding buffer, identical to PositionalEncoding.__init__
    position = jnp.arange(max_len, dtype=jnp.float32)[:, None]
    div_term = jnp.exp(jnp.arange(0, E, 2, dtype=jnp.float32) * (-math.log(10000.0) / E))
    pe = jnp.zeros((max_len, E), jnp.float32)
    pe = pe.at[:, 0::2].set(jnp.sin(position * div_term))
    pe = pe.at[:, 1::2].set(jnp.cos(position * div_term))
    params["pe"] = pe
    return params


if __name__ == "__main__":
    # small shapes consistent with the module's forward
    S, B = 8, 2
    input_dim, output_dim, hidden_dim, num_heads, num_layers = 32, 16, 64, 4, 2

    key = jax.random.PRNGKey(0)
    pkey, xkey = jax.random.split(key)
    params = init_params(pkey, input_dim, output_dim, hidden_dim, num_layers)
    src = jax.random.normal(xkey, (S, B, input_dim), jnp.float32)

    out = transformer_forward(src, params, n_heads=num_heads, n_layers=num_layers,
                              batch_block=1)
    out = jax.block_until_ready(out)

    assert out.shape == (S, B, output_dim)
    assert bool(jnp.all(jnp.isfinite(out)))
    print("KERNEL_OK")
</pallas_src>

<mosaic_0001>
module attributes {stable_mosaic.version = 11 : i64} {
  func.func @kernel(%arg0: i32, %arg1: i32, %arg2: memref<8x32xf32, #tpu.memory_space<vmem>>, %arg3: memref<8x32xf32, #tpu.memory_space<vmem>>, %arg4: memref<1x32x96xbf16, #tpu.memory_space<vmem>>, %arg5: memref<1x1x96xf32, #tpu.memory_space<vmem>>, %arg6: memref<1x32x32xbf16, #tpu.memory_space<vmem>>, %arg7: memref<1x1x32xf32, #tpu.memory_space<vmem>>, %arg8: memref<1x1x32xf32, #tpu.memory_space<vmem>>, %arg9: memref<1x1x32xf32, #tpu.memory_space<vmem>>, %arg10: memref<1x32x128xbf16, #tpu.memory_space<vmem>>, %arg11: memref<1x1x128xf32, #tpu.memory_space<vmem>>, %arg12: memref<1x128x32xbf16, #tpu.memory_space<vmem>>, %arg13: memref<1x1x32xf32, #tpu.memory_space<vmem>>, %arg14: memref<1x1x32xf32, #tpu.memory_space<vmem>>, %arg15: memref<1x1x32xf32, #tpu.memory_space<vmem>>, %arg16: memref<32x128xbf16, #tpu.memory_space<vmem>>, %arg17: memref<1x128xf32, #tpu.memory_space<vmem>>, %arg18: memref<8x128xf32, #tpu.memory_space<vmem>>, %arg19: memref<8x32xf32, #tpu.memory_space<vmem>>) attributes {dimension_semantics = [#tpu.dimension_semantics<parallel>, #tpu.dimension_semantics<arbitrary>], iteration_bounds = array<i64: 2, 2>, scalar_prefetch = 0 : i64, scratch_operands = 1 : i64, tpu.core_type = #tpu.core_type<tc>, window_params = [{transform_indices = @transform_0, window_bounds = array<i64: 8, 32>}, {pipeline_mode = #tpu.pipeline_mode<synchronous>, transform_indices = @transform_1, window_bounds = array<i64: 8, 32>}, {transform_indices = @transform_2, window_bounds = array<i64: 1, 32, 96>}, {transform_indices = @transform_3, window_bounds = array<i64: 1, 1, 96>}, {transform_indices = @transform_4, window_bounds = array<i64: 1, 32, 32>}, {transform_indices = @transform_5, window_bounds = array<i64: 1, 1, 32>}, {transform_indices = @transform_6, window_bounds = array<i64: 1, 1, 32>}, {transform_indices = @transform_7, window_bounds = array<i64: 1, 1, 32>}, {transform_indices = @transform_8, window_bounds = array<i64: 1, 32, 128>}, {transform_indices = @transform_9, window_bounds = array<i64: 1, 1, 128>}, {transform_indices = @transform_10, window_bounds = array<i64: 1, 128, 32>}, {transform_indices = @transform_11, window_bounds = array<i64: 1, 1, 32>}, {transform_indices = @transform_12, window_bounds = array<i64: 1, 1, 32>}, {transform_indices = @transform_13, window_bounds = array<i64: 1, 1, 32>}, {pipeline_mode = #tpu.pipeline_mode<synchronous>, transform_indices = @transform_14, window_bounds = array<i64: 32, 128>}, {pipeline_mode = #tpu.pipeline_mode<synchronous>, transform_indices = @transform_15, window_bounds = array<i64: 1, 128>}, {transform_indices = @transform_16, window_bounds = array<i64: 8, 128>}]} {
    %c0_i32 = arith.constant 0 : i32
    %0 = arith.cmpi eq, %arg1, %c0_i32 : i32
    %1 = arith.extui %0 : i1 to i32
    %c0_i32_0 = arith.constant 0 : i32
    %2 = arith.cmpi ne, %1, %c0_i32_0 : i32
    scf.if %2 {
      %c0_75 = arith.constant 0 : index
      %c0_76 = arith.constant 0 : index
      %188 = vector.load %arg3[%c0_75, %c0_76] : memref<8x32xf32, #tpu.memory_space<vmem>>, vector<8x32xf32>
      %c0_77 = arith.constant 0 : index
      %c0_78 = arith.constant 0 : index
      %189 = vector.load %arg2[%c0_77, %c0_78] : memref<8x32xf32, #tpu.memory_space<vmem>>, vector<8x32xf32>
      %190 = arith.addf %189, %188 : vector<8x32xf32>
      %c0_79 = arith.constant 0 : index
      %c0_80 = arith.constant 0 : index
      %191 = vector.load %arg19[%c0_79, %c0_80] : memref<8x32xf32, #tpu.memory_space<vmem>>, vector<8x32xf32>
      tpu.vector_store %arg19[%c0_79, %c0_80], %190 {strides = array<i32>} : memref<8x32xf32, #tpu.memory_space<vmem>>, vector<8x32xf32>,
    } else {
    }
    %c0 = arith.constant 0 : index
    %c0_1 = arith.constant 0 : index
    %3 = vector.load %arg19[%c0, %c0_1] : memref<8x32xf32, #tpu.memory_space<vmem>>, vector<8x32xf32>
    %4 = arith.truncf %3 : vector<8x32xf32> to vector<8x32xbf16>
    %c0_2 = arith.constant 0 : index
    %c0_3 = arith.constant 0 : index
    %c0_4 = arith.constant 0 : index
    %5 = vector.load %arg4[%c0_2, %c0_3, %c0_4] : memref<1x32x96xbf16, #tpu.memory_space<vmem>>, vector<1x32x96xbf16>
    %6 = vector.shape_cast %5 : vector<1x32x96xbf16> to vector<32x96xbf16>
    %cst = arith.constant dense<0.000000e+00> : vector<8x96xf32>
    %7 = tpu.matmul %4, %6, %cst {dimension_numbers = #tpu.dot_dimension_numbers<[1], [0], [0], [1], [0, 0, 1, 1], [], []>} : vector<8x32xbf16>, vector<32x96xbf16>, vector<8x96xf32> -> vector<8x96xf32>
    %c0_5 = arith.constant 0 : index
    %c0_6 = arith.constant 0 : index
    %c0_7 = arith.constant 0 : index
    %8 = vector.load %arg5[%c0_5, %c0_6, %c0_7] : memref<1x1x96xf32, #tpu.memory_space<vmem>>, vector<1x1x96xf32>
    %9 = vector.shape_cast %8 : vector<1x1x96xf32> to vector<1x96xf32>
    %10 = vector.broadcast %9 : vector<1x96xf32> to vector<8x96xf32>
    %11 = arith.addf %7, %10 : vector<8x96xf32>
    %12 = vector.extract_strided_slice %11 {offsets = [0, 0], sizes = [8, 32], strides = [1, 1]} : vector<8x96xf32> to vector<8x32xf32>
    %13 = vector.shape_cast %12 : vector<8x32xf32> to vector<1x8x32xf32>
    %14 = vector.extract_strided_slice %11 {offsets = [0, 32], sizes = [8, 32], strides = [1, 1]} : vector<8x96xf32> to vector<8x32xf32>
    %15 = vector.shape_cast %14 : vector<8x32xf32> to vector<1x8x32xf32>
    %16 = vector.extract_strided_slice %11 {offsets = [0, 64], sizes = [8, 32], strides = [1, 1]} : vector<8x96xf32> to vector<8x32xf32>
    %17 = vector.shape_cast %16 : vector<8x32xf32> to vector<1x8x32xf32>
    %18 = vector.extract_strided_slice %13 {offsets = [0, 0, 0], sizes = [1, 8, 8], strides = [1, 1, 1]} : vector<1x8x32xf32> to vector<1x8x8xf32>
    %19 = arith.truncf %18 : vector<1x8x8xf32> to vector<1x8x8xbf16>
    %20 = vector.extract_strided_slice %15 {offsets = [0, 0, 0], sizes = [1, 8, 8], strides = [1, 1, 1]} : vector<1x8x32xf32> to vector<1x8x8xf32>
    %21 = arith.truncf %20 : vector<1x8x8xf32> to vector<1x8x8xbf16>
    %22 = vector.extract_strided_slice %17 {offsets = [0, 0, 0], sizes = [1, 8, 8], strides = [1, 1, 1]} : vector<1x8x32xf32> to vector<1x8x8xf32>
    %23 = arith.truncf %22 : vector<1x8x8xf32> to vector<1x8x8xbf16>
    %cst_8 = arith.constant dense<0.000000e+00> : vector<1x8x8xf32>
    %24 = tpu.matmul %19, %21, %cst_8 {dimension_numbers = #tpu.dot_dimension_numbers<[2], [2], [1], [1], [0, 0, 0, 1, 1, 1], [0], [0]>} : vector<1x8x8xbf16>, vector<1x8x8xbf16>, vector<1x8x8xf32> -> vector<1x8x8xf32>
    %cst_9 = arith.constant 0.353553385 : f32
    %25 = vector.broadcast %cst_9 : f32 to vector<1x8x8xf32>
    %26 = arith.mulf %24, %25 : vector<1x8x8xf32>
    %cst_10 = arith.constant dense<0xFF800000> : vector<1x8xf32>
    %27 = vector.multi_reduction <maximumf>, %26, %cst_10 [2] : vector<1x8x8xf32> to vector<1x8xf32>
    %28 = vector.shape_cast %27 : vector<1x8xf32> to vector<1x8x1xf32>
    %29 = vector.broadcast %28 : vector<1x8x1xf32> to vector<1x8x8xf32>
    %30 = arith.subf %26, %29 : vector<1x8x8xf32>
    %31 = math.exp %30 : vector<1x8x8xf32>
    %cst_11 = arith.constant dense<0.000000e+00> : vector<1x8xf32>
    %32 = vector.multi_reduction <add>, %31, %cst_11 [2] : vector<1x8x8xf32> to vector<1x8xf32>
    %33 = vector.shape_cast %32 : vector<1x8xf32> to vector<1x8x1xf32>
    %34 = tpu.reciprocal %33 {approx = true} : vector<1x8x1xf32> -> vector<1x8x1xf32>
    %35 = vector.broadcast %34 : vector<1x8x1xf32> to vector<1x8x8xf32>
    %36 = arith.mulf %31, %35 : vector<1x8x8xf32>
    %37 = arith.truncf %36 : vector<1x8x8xf32> to vector<1x8x8xbf16>
    %cst_12 = arith.constant dense<0.000000e+00> : vector<1x8x8xf32>
    %38 = tpu.matmul %37, %23, %cst_12 {dimension_numbers = #tpu.dot_dimension_numbers<[2], [1], [1], [2], [0, 0, 0, 1, 1, 2], [0], [0]>} : vector<1x8x8xbf16>, vector<1x8x8xbf16>, vector<1x8x8xf32> -> vector<1x8x8xf32>
    %39 = vector.extract_strided_slice %13 {offsets = [0, 0, 8], sizes = [1, 8, 8], strides = [1, 1, 1]} : vector<1x8x32xf32> to vector<1x8x8xf32>
    %40 = arith.truncf %39 : vector<1x8x8xf32> to vector<1x8x8xbf16>
    %41 = vector.extract_strided_slice %15 {offsets = [0, 0, 8], sizes = [1, 8, 8], strides = [1, 1, 1]} : vector<1x8x32xf32> to vector<1x8x8xf32>
    %42 = arith.truncf %41 : vector<1x8x8xf32> to vector<1x8x8xbf16>
    %43 = vector.extract_strided_slice %17 {offsets = [0, 0, 8], sizes = [1, 8, 8], strides = [1, 1, 1]} : vector<1x8x32xf32> to vector<1x8x8xf32>
    %44 = arith.truncf %43 : vector<1x8x8xf32> to vector<1x8x8xbf16>
    %cst_13 = arith.constant dense<0.000000e+00> : vector<1x8x8xf32>
    %45 = tpu.matmul %40, %42, %cst_13 {dimension_numbers = #tpu.dot_dimension_numbers<[2], [2], [1], [1], [0, 0, 0, 1, 1, 1], [0], [0]>} : vector<1x8x8xbf16>, vector<1x8x8xbf16>, vector<1x8x8xf32> -> vector<1x8x8xf32>
    %cst_14 = arith.constant 0.353553385 : f32
    %46 = vector.broadcast %cst_14 : f32 to vector<1x8x8xf32>
    %47 = arith.mulf %45, %46 : vector<1x8x8xf32>
    %cst_15 = arith.constant dense<0xFF800000> : vector<1x8xf32>
    %48 = vector.multi_reduction <maximumf>, %47, %cst_15 [2] : vector<1x8x8xf32> to vector<1x8xf32>
    %49 = vector.shape_cast %48 : vector<1x8xf32> to vector<1x8x1xf32>
    %50 = vector.broadcast %49 : vector<1x8x1xf32> to vector<1x8x8xf32>
    %51 = arith.subf %47, %50 : vector<1x8x8xf32>
    %52 = math.exp %51 : vector<1x8x8xf32>
    %cst_16 = arith.constant dense<0.000000e+00> : vector<1x8xf32>
    %53 = vector.multi_reduction <add>, %52, %cst_16 [2] : vector<1x8x8xf32> to vector<1x8xf32>
    %54 = vector.shape_cast %53 : vector<1x8xf32> to vector<1x8x1xf32>
    %55 = tpu.reciprocal %54 {approx = true} : vector<1x8x1xf32> -> vector<1x8x1xf32>
    %56 = vector.broadcast %55 : vector<1x8x1xf32> to vector<1x8x8xf32>
    %57 = arith.mulf %52, %56 : vector<1x8x8xf32>
    %58 = arith.truncf %57 : vector<1x8x8xf32> to vector<1x8x8xbf16>
    %cst_17 = arith.constant dense<0.000000e+00> : vector<1x8x8xf32>
    %59 = tpu.matmul %58, %44, %cst_17 {dimension_numbers = #tpu.dot_dimension_numbers<[2], [1], [1], [2], [0, 0, 0, 1, 1, 2], [0], [0]>} : vector<1x8x8xbf16>, vector<1x8x8xbf16>, vector<1x8x8xf32> -> vector<1x8x8xf32>
    %60 = vector.extract_strided_slice %13 {offsets = [0, 0, 16], sizes = [1, 8, 8], strides = [1, 1, 1]} : vector<1x8x32xf32> to vector<1x8x8xf32>
    %61 = arith.truncf %60 : vector<1x8x8xf32> to vector<1x8x8xbf16>
    %62 = vector.extract_strided_slice %15 {offsets = [0, 0, 16], sizes = [1, 8, 8], strides = [1, 1, 1]} : vector<1x8x32xf32> to vector<1x8x8xf32>
    %63 = arith.truncf %62 : vector<1x8x8xf32> to vector<1x8x8xbf16>
    %64 = vector.extract_strided_slice %17 {offsets = [0, 0, 16], sizes = [1, 8, 8], strides = [1, 1, 1]} : vector<1x8x32xf32> to vector<1x8x8xf32>
    %65 = arith.truncf %64 : vector<1x8x8xf32> to vector<1x8x8xbf16>
    %cst_18 = arith.constant dense<0.000000e+00> : vector<1x8x8xf32>
    %66 = tpu.matmul %61, %63, %cst_18 {dimension_numbers = #tpu.dot_dimension_numbers<[2], [2], [1], [1], [0, 0, 0, 1, 1, 1], [0], [0]>} : vector<1x8x8xbf16>, vector<1x8x8xbf16>, vector<1x8x8xf32> -> vector<1x8x8xf32>
    %cst_19 = arith.constant 0.353553385 : f32
    %67 = vector.broadcast %cst_19 : f32 to vector<1x8x8xf32>
    %68 = arith.mulf %66, %67 : vector<1x8x8xf32>
    %cst_20 = arith.constant dense<0xFF800000> : vector<1x8xf32>
    %69 = vector.multi_reduction <maximumf>, %68, %cst_20 [2] : vector<1x8x8xf32> to vector<1x8xf32>
    %70 = vector.shape_cast %69 : vector<1x8xf32> to vector<1x8x1xf32>
    %71 = vector.broadcast %70 : vector<1x8x1xf32> to vector<1x8x8xf32>
    %72 = arith.subf %68, %71 : vector<1x8x8xf32>
    %73 = math.exp %72 : vector<1x8x8xf32>
    %cst_21 = arith.constant dense<0.000000e+00> : vector<1x8xf32>
    %74 = vector.multi_reduction <add>, %73, %cst_21 [2] : vector<1x8x8xf32> to vector<1x8xf32>
    %75 = vector.shape_cast %74 : vector<1x8xf32> to vector<1x8x1xf32>
    %76 = tpu.reciprocal %75 {approx = true} : vector<1x8x1xf32> -> vector<1x8x1xf32>
    %77 = vector.broadcast %76 : vector<1x8x1xf32> to vector<1x8x8xf32>
    %78 = arith.mulf %73, %77 : vector<1x8x8xf32>
    %79 = arith.truncf %78 : vector<1x8x8xf32> to vector<1x8x8xbf16>
    %cst_22 = arith.constant dense<0.000000e+00> : vector<1x8x8xf32>
    %80 = tpu.matmul %79, %65, %cst_22 {dimension_numbers = #tpu.dot_dimension_numbers<[2], [1], [1], [2], [0, 0, 0, 1, 1, 2], [0], [0]>} : vector<1x8x8xbf16>, vector<1x8x8xbf16>, vector<1x8x8xf32> -> vector<1x8x8xf32>
    %81 = vector.extract_strided_slice %13 {offsets = [0, 0, 24], sizes = [1, 8, 8], strides = [1, 1, 1]} : vector<1x8x32xf32> to vector<1x8x8xf32>
    %82 = arith.truncf %81 : vector<1x8x8xf32> to vector<1x8x8xbf16>
    %83 = vector.extract_strided_slice %15 {offsets = [0, 0, 24], sizes = [1, 8, 8], strides = [1, 1, 1]} : vector<1x8x32xf32> to vector<1x8x8xf32>
    %84 = arith.truncf %83 : vector<1x8x8xf32> to vector<1x8x8xbf16>
    %85 = vector.extract_strided_slice %17 {offsets = [0, 0, 24], sizes = [1, 8, 8], strides = [1, 1, 1]} : vector<1x8x32xf32> to vector<1x8x8xf32>
    %86 = arith.truncf %85 : vector<1x8x8xf32> to vector<1x8x8xbf16>
    %cst_23 = arith.constant dense<0.000000e+00> : vector<1x8x8xf32>
    %87 = tpu.matmul %82, %84, %cst_23 {dimension_numbers = #tpu.dot_dimension_numbers<[2], [2], [1], [1], [0, 0, 0, 1, 1, 1], [0], [0]>} : vector<1x8x8xbf16>, vector<1x8x8xbf16>, vector<1x8x8xf32> -> vector<1x8x8xf32>
    %cst_24 = arith.constant 0.353553385 : f32
    %88 = vector.broadcast %cst_24 : f32 to vector<1x8x8xf32>
    %89 = arith.mulf %87, %88 : vector<1x8x8xf32>
    %cst_25 = arith.constant dense<0xFF800000> : vector<1x8xf32>
    %90 = vector.multi_reduction <maximumf>, %89, %cst_25 [2] : vector<1x8x8xf32> to vector<1x8xf32>
    %91 = vector.shape_cast %90 : vector<1x8xf32> to vector<1x8x1xf32>
    %92 = vector.broadcast %91 : vector<1x8x1xf32> to vector<1x8x8xf32>
    %93 = arith.subf %89, %92 : vector<1x8x8xf32>
    %94 = math.exp %93 : vector<1x8x8xf32>
    %cst_26 = arith.constant dense<0.000000e+00> : vector<1x8xf32>
    %95 = vector.multi_reduction <add>, %94, %cst_26 [2] : vector<1x8x8xf32> to vector<1x8xf32>
    %96 = vector.shape_cast %95 : vector<1x8xf32> to vector<1x8x1xf32>
    %97 = tpu.reciprocal %96 {approx = true} : vector<1x8x1xf32> -> vector<1x8x1xf32>
    %98 = vector.broadcast %97 : vector<1x8x1xf32> to vector<1x8x8xf32>
    %99 = arith.mulf %94, %98 : vector<1x8x8xf32>
    %100 = arith.truncf %99 : vector<1x8x8xf32> to vector<1x8x8xbf16>
    %cst_27 = arith.constant dense<0.000000e+00> : vector<1x8x8xf32>
    %101 = tpu.matmul %100, %86, %cst_27 {dimension_numbers = #tpu.dot_dimension_numbers<[2], [1], [1], [2], [0, 0, 0, 1, 1, 2], [0], [0]>} : vector<1x8x8xbf16>, vector<1x8x8xbf16>, vector<1x8x8xf32> -> vector<1x8x8xf32>
    %102 = tpu.concatenate %38, %59, %80, %101 in 2 : vector<1x8x8xf32>, vector<1x8x8xf32>, vector<1x8x8xf32>, vector<1x8x8xf32> -> vector<1x8x32xf32>
    %103 = vector.shape_cast %102 : vector<1x8x32xf32> to vector<8x32xf32>
    %104 = arith.truncf %103 : vector<8x32xf32> to vector<8x32xbf16>
    %c0_28 = arith.constant 0 : index
    %c0_29 = arith.constant 0 : index
    %c0_30 = arith.constant 0 : index
    %105 = vector.load %arg6[%c0_28, %c0_29, %c0_30] : memref<1x32x32xbf16, #tpu.memory_space<vmem>>, vector<1x32x32xbf16>
    %106 = vector.shape_cast %105 : vector<1x32x32xbf16> to vector<32x32xbf16>
    %cst_31 = arith.constant dense<0.000000e+00> : vector<8x32xf32>
    %107 = tpu.matmul %104, %106, %cst_31 {dimension_numbers = #tpu.dot_dimension_numbers<[1], [0], [0], [1], [0, 0, 1, 1], [], []>} : vector<8x32xbf16>, vector<32x32xbf16>, vector<8x32xf32> -> vector<8x32xf32>
    %c0_32 = arith.constant 0 : index
    %c0_33 = arith.constant 0 : index
    %c0_34 = arith.constant 0 : index
    %108 = vector.load %arg7[%c0_32, %c0_33, %c0_34] : memref<1x1x32xf32, #tpu.memory_space<vmem>>, vector<1x1x32xf32>
    %109 = vector.shape_cast %108 : vector<1x1x32xf32> to vector<1x32xf32>
    %110 = vector.broadcast %109 : vector<1x32xf32> to vector<8x32xf32>
    %111 = arith.addf %107, %110 : vector<8x32xf32>
    %112 = arith.addf %3, %111 : vector<8x32xf32>
    %c0_35 = arith.constant 0 : index
    %c0_36 = arith.constant 0 : index
    %c0_37 = arith.constant 0 : index
    %113 = vector.load %arg8[%c0_35, %c0_36, %c0_37] : memref<1x1x32xf32, #tpu.memory_space<vmem>>, vector<1x1x32xf32>
    %114 = vector.shape_cast %113 : vector<1x1x32xf32> to vector<1x32xf32>
    %c0_38 = arith.constant 0 : index
    %c0_39 = arith.constant 0 : index
    %c0_40 = arith.constant 0 : index
    %115 = vector.load %arg9[%c0_38, %c0_39, %c0_40] : memref<1x1x32xf32, #tpu.memory_space<vmem>>, vector<1x1x32xf32>
    %116 = vector.shape_cast %115 : vector<1x1x32xf32> to vector<1x32xf32>
    %cst_41 = arith.constant dense<0.000000e+00> : vector<8xf32>
    %117 = vector.multi_reduction <add>, %112, %cst_41 [1] : vector<8x32xf32> to vector<8xf32>
    %118 = vector.shape_cast %117 : vector<8xf32> to vector<8x1xf32>
    %cst_42 = arith.constant 3.200000e+01 : f32
    %119 = vector.broadcast %cst_42 : f32 to vector<8x1xf32>
    %120 = arith.divf %118, %119 : vector<8x1xf32>
    %121 = vector.broadcast %120 : vector<8x1xf32> to vector<8x32xf32>
    %122 = arith.subf %112, %121 : vector<8x32xf32>
    %123 = arith.mulf %122, %122 : vector<8x32xf32>
    %cst_43 = arith.constant dense<0.000000e+00> : vector<8xf32>
    %124 = vector.multi_reduction <add>, %123, %cst_43 [1] : vector<8x32xf32> to vector<8xf32>
    %125 = vector.shape_cast %124 : vector<8xf32> to vector<8x1xf32>
    %cst_44 = arith.constant 3.200000e+01 : f32
    %126 = vector.broadcast %cst_44 : f32 to vector<8x1xf32>
    %127 = arith.divf %125, %126 : vector<8x1xf32>
    %128 = vector.broadcast %120 : vector<8x1xf32> to vector<8x32xf32>
    %129 = arith.subf %112, %128 : vector<8x32xf32>
    %cst_45 = arith.constant 9.99999974E-6 : f32
    %130 = vector.broadcast %cst_45 : f32 to vector<8x1xf32>
    %131 = arith.addf %127, %130 : vector<8x1xf32>
    %132 = math.rsqrt %131 : vector<8x1xf32>
    %133 = vector.broadcast %132 : vector<8x1xf32> to vector<8x32xf32>
    %134 = arith.mulf %129, %133 : vector<8x32xf32>
    %135 = vector.broadcast %114 : vector<1x32xf32> to vector<8x32xf32>
    %136 = arith.mulf %134, %135 : vector<8x32xf32>
    %137 = vector.broadcast %116 : vector<1x32xf32> to vector<8x32xf32>
    %138 = arith.addf %136, %137 : vector<8x32xf32>
    %139 = arith.truncf %138 : vector<8x32xf32> to vector<8x32xbf16>
    %c0_46 = arith.constant 0 : index
    %c0_47 = arith.constant 0 : index
    %c0_48 = arith.constant 0 : index
    %140 = vector.load %arg10[%c0_46, %c0_47, %c0_48] : memref<1x32x128xbf16, #tpu.memory_space<vmem>>, vector<1x32x128xbf16>
    %141 = vector.shape_cast %140 : vector<1x32x128xbf16> to vector<32x128xbf16>
    %cst_49 = arith.constant dense<0.000000e+00> : vector<8x128xf32>
    %142 = tpu.matmul %139, %141, %cst_49 {dimension_numbers = #tpu.dot_dimension_numbers<[1], [0], [0], [1], [0, 0, 1, 1], [], []>} : vector<8x32xbf16>, vector<32x128xbf16>, vector<8x128xf32> -> vector<8x128xf32>
    %c0_50 = arith.constant 0 : index
    %c0_51 = arith.constant 0 : index
    %c0_52 = arith.constant 0 : index
    %143 = vector.load %arg11[%c0_50, %c0_51, %c0_52] : memref<1x1x128xf32, #tpu.memory_space<vmem>>, vector<1x1x128xf32>
    %144 = vector.shape_cast %143 : vector<1x1x128xf32> to vector<1x128xf32>
    %145 = vector.broadcast %144 : vector<1x128xf32> to vector<8x128xf32>
    %146 = arith.addf %142, %145 : vector<8x128xf32>
    %cst_53 = arith.constant 0.000000e+00 : f32
    %147 = vector.broadcast %cst_53 : f32 to vector<8x128xf32>
    %148 = arith.maximumf %146, %147 : vector<8x128xf32>
    %149 = arith.truncf %148 : vector<8x128xf32> to vector<8x128xbf16>
    %c0_54 = arith.constant 0 : index
    %c0_55 = arith.constant 0 : index
    %c0_56 = arith.constant 0 : index
    %150 = vector.load %arg12[%c0_54, %c0_55, %c0_56] : memref<1x128x32xbf16, #tpu.memory_space<vmem>>, vector<1x128x32xbf16>
    %151 = vector.shape_cast %150 : vector<1x128x32xbf16> to vector<128x32xbf16>
    %cst_57 = arith.constant dense<0.000000e+00> : vector<8x32xf32>
    %152 = tpu.matmul %149, %151, %cst_57 {dimension_numbers = #tpu.dot_dimension_numbers<[1], [0], [0], [1], [0, 0, 1, 1], [], []>} : vector<8x128xbf16>, vector<128x32xbf16>, vector<8x32xf32> -> vector<8x32xf32>
    %c0_58 = arith.constant 0 : index
    %c0_59 = arith.constant 0 : index
    %c0_60 = arith.constant 0 : index
    %153 = vector.load %arg13[%c0_58, %c0_59, %c0_60] : memref<1x1x32xf32, #tpu.memory_space<vmem>>, vector<1x1x32xf32>
    %154 = vector.shape_cast %153 : vector<1x1x32xf32> to vector<1x32xf32>
    %155 = vector.broadcast %154 : vector<1x32xf32> to vector<8x32xf32>
    %156 = arith.addf %152, %155 : vector<8x32xf32>
    %157 = arith.addf %138, %156 : vector<8x32xf32>
    %c0_61 = arith.constant 0 : index
    %c0_62 = arith.constant 0 : index
    %c0_63 = arith.constant 0 : index
    %158 = vector.load %arg14[%c0_61, %c0_62, %c0_63] : memref<1x1x32xf32, #tpu.memory_space<vmem>>, vector<1x1x32xf32>
    %159 = vector.shape_cast %158 : vector<1x1x32xf32> to vector<1x32xf32>
    %c0_64 = arith.constant 0 : index
    %c0_65 = arith.constant 0 : index
    %c0_66 = arith.constant 0 : index
    %160 = vector.load %arg15[%c0_64, %c0_65, %c0_66] : memref<1x1x32xf32, #tpu.memory_space<vmem>>, vector<1x1x32xf32>
    %161 = vector.shape_cast %160 : vector<1x1x32xf32> to vector<1x32xf32>
    %cst_67 = arith.constant dense<0.000000e+00> : vector<8xf32>
    %162 = vector.multi_reduction <add>, %157, %cst_67 [1] : vector<8x32xf32> to vector<8xf32>
    %163 = vector.shape_cast %162 : vector<8xf32> to vector<8x1xf32>
    %cst_68 = arith.constant 3.200000e+01 : f32
    %164 = vector.broadcast %cst_68 : f32 to vector<8x1xf32>
    %165 = arith.divf %163, %164 : vector<8x1xf32>
    %166 = vector.broadcast %165 : vector<8x1xf32> to vector<8x32xf32>
    %167 = arith.subf %157, %166 : vector<8x32xf32>
    %168 = arith.mulf %167, %167 : vector<8x32xf32>
    %cst_69 = arith.constant dense<0.000000e+00> : vector<8xf32>
    %169 = vector.multi_reduction <add>, %168, %cst_69 [1] : vector<8x32xf32> to vector<8xf32>
    %170 = vector.shape_cast %169 : vector<8xf32> to vector<8x1xf32>
    %cst_70 = arith.constant 3.200000e+01 : f32
    %171 = vector.broadcast %cst_70 : f32 to vector<8x1xf32>
    %172 = arith.divf %170, %171 : vector<8x1xf32>
    %173 = vector.broadcast %165 : vector<8x1xf32> to vector<8x32xf32>
    %174 = arith.subf %157, %173 : vector<8x32xf32>
    %cst_71 = arith.constant 9.99999974E-6 : f32
    %175 = vector.broadcast %cst_71 : f32 to vector<8x1xf32>
    %176 = arith.addf %172, %175 : vector<8x1xf32>
    %177 = math.rsqrt %176 : vector<8x1xf32>
    %178 = vector.broadcast %177 : vector<8x1xf32> to vector<8x32xf32>
    %179 = arith.mulf %174, %178 : vector<8x32xf32>
    %180 = vector.broadcast %159 : vector<1x32xf32> to vector<8x32xf32>
    %181 = arith.mulf %179, %180 : vector<8x32xf32>
    %182 = vector.broadcast %161 : vector<1x32xf32> to vector<8x32xf32>
    %183 = arith.addf %181, %182 : vector<8x32xf32>
    %c0_72 = arith.constant 0 : index
    %c0_73 = arith.constant 0 : index
    %184 = vector.load %arg19[%c0_72, %c0_73] : memref<8x32xf32, #tpu.memory_space<vmem>>, vector<8x32xf32>
    tpu.vector_store %arg19[%c0_72, %c0_73], %183 {strides = array<i32>} : memref<8x32xf32, #tpu.memory_space<vmem>>, vector<8x32xf32>,
    %c1_i32 = arith.constant 1 : i32
    %185 = arith.cmpi eq, %arg1, %c1_i32 : i32
    %186 = arith.extui %185 : i1 to i32
    %c0_i32_74 = arith.constant 0 : i32
    %187 = arith.cmpi ne, %186, %c0_i32_74 : i32
    scf.if %187 {
      %188 = arith.truncf %183 : vector<8x32xf32> to vector<8x32xbf16>
      %c0_75 = arith.constant 0 : index
      %c0_76 = arith.constant 0 : index
      %189 = vector.load %arg16[%c0_75, %c0_76] : memref<32x128xbf16, #tpu.memory_space<vmem>>, vector<32x128xbf16>
      %cst_77 = arith.constant dense<0.000000e+00> : vector<8x128xf32>
      %190 = tpu.matmul %188, %189, %cst_77 {dimension_numbers = #tpu.dot_dimension_numbers<[1], [0], [0], [1], [0, 0, 1, 1], [], []>} : vector<8x32xbf16>, vector<32x128xbf16>, vector<8x128xf32> -> vector<8x128xf32>
      %c0_78 = arith.constant 0 : index
      %c0_79 = arith.constant 0 : index
      %191 = vector.load %arg17[%c0_78, %c0_79] : memref<1x128xf32, #tpu.memory_space<vmem>>, vector<1x128xf32>
      %192 = vector.broadcast %191 : vector<1x128xf32> to vector<8x128xf32>
      %193 = arith.addf %190, %192 : vector<8x128xf32>
      %c0_80 = arith.constant 0 : index
      %c0_81 = arith.constant 0 : index
      %194 = vector.load %arg18[%c0_80, %c0_81] : memref<8x128xf32, #tpu.memory_space<vmem>>, vector<8x128xf32>
      tpu.vector_store %arg18[%c0_80, %c0_81], %193 {strides = array<i32>} : memref<8x128xf32, #tpu.memory_space<vmem>>, vector<8x128xf32>,
    } else {
    }
    return
  }
  func.func @transform_0(%arg0: i32, %arg1: i32) -> (i32, i32) {
    %c0_i32 = arith.constant 0 : i32
    %c0_i32_0 = arith.constant 0 : i32
    return %arg0, %c0_i32 : i32, i32
  }
  func.func @transform_1(%arg0: i32, %arg1: i32) -> (i32, i32) {
    %c0_i32 = arith.constant 0 : i32
    %c0_i32_0 = arith.constant 0 : i32
    %c0_i32_1 = arith.constant 0 : i32
    return %c0_i32, %c0_i32_0 : i32, i32
  }
  func.func @transform_2(%arg0: i32, %arg1: i32) -> (i32, i32, i32) {
    %c0_i32 = arith.constant 0 : i32
    %c0_i32_0 = arith.constant 0 : i32
    %c0_i32_1 = arith.constant 0 : i32
    return %arg1, %c0_i32, %c0_i32_0 : i32, i32, i32
  }
  func.func @transform_3(%arg0: i32, %arg1: i32) -> (i32, i32, i32) {
    %c0_i32 = arith.constant 0 : i32
    %c0_i32_0 = arith.constant 0 : i32
    %c0_i32_1 = arith.constant 0 : i32
    return %arg1, %c0_i32, %c0_i32_0 : i32, i32, i32
  }
  func.func @transform_4(%arg0: i32, %arg1: i32) -> (i32, i32, i32) {
    %c0_i32 = arith.constant 0 : i32
    %c0_i32_0 = arith.constant 0 : i32
    %c0_i32_1 = arith.constant 0 : i32
    return %arg1, %c0_i32, %c0_i32_0 : i32, i32, i32
  }
  func.func @transform_5(%arg0: i32, %arg1: i32) -> (i32, i32, i32) {
    %c0_i32 = arith.constant 0 : i32
    %c0_i32_0 = arith.constant 0 : i32
    %c0_i32_1 = arith.constant 0 : i32
    return %arg1, %c0_i32, %c0_i32_0 : i32, i32, i32
  }
  func.func @transform_6(%arg0: i32, %arg1: i32) -> (i32, i32, i32) {
    %c0_i32 = arith.constant 0 : i32
    %c0_i32_0 = arith.constant 0 : i32
    %c0_i32_1 = arith.constant 0 : i32
    return %arg1, %c0_i32, %c0_i32_0 : i32, i32, i32
  }
  func.func @transform_7(%arg0: i32, %arg1: i32) -> (i32, i32, i32) {
    %c0_i32 = arith.constant 0 : i32
    %c0_i32_0 = arith.constant 0 : i32
    %c0_i32_1 = arith.constant 0 : i32
    return %arg1, %c0_i32, %c0_i32_0 : i32, i32, i32
  }
  func.func @transform_8(%arg0: i32, %arg1: i32) -> (i32, i32, i32) {
    %c0_i32 = arith.constant 0 : i32
    %c0_i32_0 = arith.constant 0 : i32
    %c0_i32_1 = arith.constant 0 : i32
    return %arg1, %c0_i32, %c0_i32_0 : i32, i32, i32
  }
  func.func @transform_9(%arg0: i32, %arg1: i32) -> (i32, i32, i32) {
    %c0_i32 = arith.constant 0 : i32
    %c0_i32_0 = arith.constant 0 : i32
    %c0_i32_1 = arith.constant 0 : i32
    return %arg1, %c0_i32, %c0_i32_0 : i32, i32, i32
  }
  func.func @transform_10(%arg0: i32, %arg1: i32) -> (i32, i32, i32) {
    %c0_i32 = arith.constant 0 : i32
    %c0_i32_0 = arith.constant 0 : i32
    %c0_i32_1 = arith.constant 0 : i32
    return %arg1, %c0_i32, %c0_i32_0 : i32, i32, i32
  }
  func.func @transform_11(%arg0: i32, %arg1: i32) -> (i32, i32, i32) {
    %c0_i32 = arith.constant 0 : i32
    %c0_i32_0 = arith.constant 0 : i32
    %c0_i32_1 = arith.constant 0 : i32
    return %arg1, %c0_i32, %c0_i32_0 : i32, i32, i32
  }
  func.func @transform_12(%arg0: i32, %arg1: i32) -> (i32, i32, i32) {
    %c0_i32 = arith.constant 0 : i32
    %c0_i32_0 = arith.constant 0 : i32
    %c0_i32_1 = arith.constant 0 : i32
    return %arg1, %c0_i32, %c0_i32_0 : i32, i32, i32
  }
  func.func @transform_13(%arg0: i32, %arg1: i32) -> (i32, i32, i32) {
    %c0_i32 = arith.constant 0 : i32
    %c0_i32_0 = arith.constant 0 : i32
    %c0_i32_1 = arith.constant 0 : i32
    return %arg1, %c0_i32, %c0_i32_0 : i32, i32, i32
  }
  func.func @transform_14(%arg0: i32, %arg1: i32) -> (i32, i32) {
    %c0_i32 = arith.constant 0 : i32
    %c0_i32_0 = arith.constant 0 : i32
    %c0_i32_1 = arith.constant 0 : i32
    return %c0_i32, %c0_i32_0 : i32, i32
  }
  func.func @transform_15(%arg0: i32, %arg1: i32) -> (i32, i32) {
    %c0_i32 = arith.constant 0 : i32
    %c0_i32_0 = arith.constant 0 : i32
    %c0_i32_1 = arith.constant 0 : i32
    return %c0_i32, %c0_i32_0 : i32, i32
  }
  func.func @transform_16(%arg0: i32, %arg1: i32) -> (i32, i32) {
    %c0_i32 = arith.constant 0 : i32
    %c0_i32_0 = arith.constant 0 : i32
    return %arg0, %c0_i32 : i32, i32
  }
}

</mosaic_0001>

<llo_original>
// kernel: transformer_forward.1
$region0: #{transformer_forward.1}
  #allocation0 [shape = 'u32[]', space=smem, size = 0x4, offset = 0x4, fixed_abs, tag = 'smem constant byte address 0x4 - core index']
  #allocation1 [shape = 'u32[144,128]{1,0:T(1,128)}', space=vmem, size = 0x12000, scoped, tag = 'internal scratch']
  #allocation2 [shape = 'f32[8,32]{1,0:T(8,128)}', space=vmem, size = 0x1000, scoped, tag = 'scratch operand']
  %s0 = inlined_call_operand.vmem [shape: f32[16,32], index: 0, kind: input, shape index: {}]
  %s1 = inlined_call_operand.vmem [shape: f32[8,32], index: 1, kind: input, shape index: {}]
  %s2 = inlined_call_operand.vmem [shape: bf16[2,32,96], index: 2, kind: input, shape index: {}]
  %s3 = inlined_call_operand.vmem [shape: f32[2,1,96], index: 3, kind: input, shape index: {}]
  %s4 = inlined_call_operand.vmem [shape: bf16[2,32,32], index: 4, kind: input, shape index: {}]
  %s5 = inlined_call_operand.vmem [shape: f32[2,1,32], index: 5, kind: input, shape index: {}]
  %s6 = inlined_call_operand.vmem [shape: f32[2,1,32], index: 6, kind: input, shape index: {}]
  %s7 = inlined_call_operand.vmem [shape: f32[2,1,32], index: 7, kind: input, shape index: {}]
  %s8 = inlined_call_operand.vmem [shape: bf16[2,32,128], index: 8, kind: input, shape index: {}]
  %s9 = inlined_call_operand.vmem [shape: f32[2,1,128], index: 9, kind: input, shape index: {}]
  %s10 = inlined_call_operand.vmem [shape: bf16[2,128,32], index: 10, kind: input, shape index: {}]
  %s11 = inlined_call_operand.vmem [shape: f32[2,1,32], index: 11, kind: input, shape index: {}]
  %s12 = inlined_call_operand.vmem [shape: f32[2,1,32], index: 12, kind: input, shape index: {}]
  %s13 = inlined_call_operand.vmem [shape: f32[2,1,32], index: 13, kind: input, shape index: {}]
  %s14 = inlined_call_operand.vmem [shape: bf16[32,128], index: 14, kind: input, shape index: {}]
  %s15 = inlined_call_operand.vmem [shape: f32[1,128], index: 15, kind: input, shape index: {}]
  %s16 = inlined_call_operand.vmem [shape: f32[16,128], index: 16, kind: output, shape index: {}]
  %s17 = sld [smem:[#allocation0]]
  $region105: #{transformer_forward.1} parent=0
    _
  %s19 = ssub.s32 1, %s17
  %s20 = scalar_select 0, %s19, %s17
  loop: start=0, step=1, limit=6
  $region2: #{transformer_forward.1} parent=0 // loop_pre_header
    _
  $region3: #{transformer_forward.1} parent=0 // loop_header
    %s22 = sphi 0, %s26
    %p23 = scmp.ge.s32.totalorder %s22, 6
    %s29 = sphi 0, %s41
    %s30 = sphi 0, %s37
    %s31 = sphi 0, %s29
    %s32 = sphi 0, %s30
    %s33 = sphi 0, %s31
    %s34 = sphi 0, %s32
    %s44 = sphi 0, %s46
    %s47 = sphi 0, %s44
    %s48 = sphi 0, %s47
    %s64 = sphi 0, %s48
    %s68 = sphi 0, %s68
    %s70 = sphi 0, %s68
    %s71 = sphi 0, %s70
    %s85 = sphi 0, %s71
    %s91 = sphi 0, %s93
    %s94 = sphi 0, %s91
    %s95 = sphi 0, %s94
    %s111 = sphi 0, %s95
    %s117 = sphi 0, %s119
    %s120 = sphi 0, %s117
    %s121 = sphi 0, %s120
    %s137 = sphi 0, %s121
    %s143 = sphi 0, %s145
    %s146 = sphi 0, %s143
    %s147 = sphi 0, %s146
    %s163 = sphi 0, %s147
    %s169 = sphi 0, %s171
    %s172 = sphi 0, %s169
    %s173 = sphi 0, %s172
    %s189 = sphi 0, %s173
    %s195 = sphi 0, %s197
    %s198 = sphi 0, %s195
    %s199 = sphi 0, %s198
    %s215 = sphi 0, %s199
    %s221 = sphi 0, %s223
    %s224 = sphi 0, %s221
    %s225 = sphi 0, %s224
    %s241 = sphi 0, %s225
    %s247 = sphi 0, %s249
    %s250 = sphi 0, %s247
    %s251 = sphi 0, %s250
    %s267 = sphi 0, %s251
    %s273 = sphi 0, %s275
    %s276 = sphi 0, %s273
    %s277 = sphi 0, %s276
    %s293 = sphi 0, %s277
    %s299 = sphi 0, %s301
    %s302 = sphi 0, %s299
    %s303 = sphi 0, %s302
    %s319 = sphi 0, %s303
    %s325 = sphi 0, %s327
    %s328 = sphi 0, %s325
    %s329 = sphi 0, %s328
    %s345 = sphi 0, %s329
    %s351 = sphi 0, %s353
    %s354 = sphi 0, %s351
    %s355 = sphi 0, %s354
    %s371 = sphi 0, %s355
    %s377 = sphi 0, %s379
    %s380 = sphi 0, %s377
    %s381 = sphi 0, %s380
    %s397 = sphi 0, %s381
    %s401 = sphi 0, %s401
    %s403 = sphi 0, %s401
    %s404 = sphi 0, %s403
    %s418 = sphi 0, %s404
    %s422 = sphi 0, %s422
    %s424 = sphi 0, %s422
    %s425 = sphi 0, %s424
    %s439 = sphi 0, %s425
    %s445 = sphi 0, %s447
    %s448 = sphi 0, %s445
    %s449 = sphi 0, %s448
    %s465 = sphi 0, %s449
  $region4: #{transformer_forward.1} parent=0 // loop_header_branch
    %25 = sbr.rel (%p23) target = $region8
  $region5: #{transformer_forward.1} parent=0 // loop_body
    %s27 = ssub.s32 %s22, 1
    %s28 = ssub.s32 %s22, 2
    %s35 = sadd.s32 1, %s30
    %p36 = scmp.ge.s32.totalorder %s35, 2
    %s37 = scalar_select %p36, 0, %s35
    %s38 = sadd.s32 1, %s29
    %s39 = scalar_select %p36, %s38, %s29
    %p40 = scmp.ge.s32.totalorder %s39, 2
    %s41 = scalar_select %p40, 0, %s39
    %s42 = ssub.s32 %s29, %s41
    %p43 = scmp.eq.s32.totalorder %s42, 0
    %s45 = sadd.s32 %s44, 1
    %s46 = scalar_select %p43, %s44, %s45
    %p49 = pneg %p43
    %p50 = scmp.eq.s32.totalorder %s22, 3
    %p51 = por %p49, %p50
    %p52 = scmp.ne.s32.totalorder %s44, %s47
    %p53 = scmp.eq.s32.totalorder %s22, 0
    %p54 = por %p52, %p53
    %p55 = scmp.ne.s32.totalorder %s44, %s47
    %p56 = scmp.eq.s32.totalorder %s27, 3
    %p57 = por %p55, %p56
    %p58 = scmp.ne.s32.totalorder %s47, %s48
    %p59 = scmp.eq.s32.totalorder %s27, 0
    %p60 = por %p58, %p59
    %p61 = scmp.ne.s32.totalorder %s47, %s48
    %p62 = scmp.eq.s32.totalorder %s28, 3
    %p63 = por %p61, %p62
    %p65 = scmp.ne.s32.totalorder %s48, %s64
    %p66 = scmp.eq.s32.totalorder %s28, 0
    %p67 = por %p65, %p66
    %s69 = sadd.s32 %s68, 1
    %p72 = scmp.eq.s32.totalorder %s22, 3
    %p73 = scmp.ne.s32.totalorder %s68, %s70
    %p74 = scmp.eq.s32.totalorder %s22, 0
    %p75 = por %p73, %p74
    %p76 = scmp.ne.s32.totalorder %s68, %s70
    %p77 = scmp.eq.s32.totalorder %s27, 3
    %p78 = por %p76, %p77
    %p79 = scmp.ne.s32.totalorder %s70, %s71
    %p80 = scmp.eq.s32.totalorder %s27, 0
    %p81 = por %p79, %p80
    %p82 = scmp.ne.s32.totalorder %s70, %s71
    %p83 = scmp.eq.s32.totalorder %s28, 3
    %p84 = por %p82, %p83
    %p86 = scmp.ne.s32.totalorder %s71, %s85
    %p87 = scmp.eq.s32.totalorder %s28, 0
    %p88 = por %p86, %p87
    %s89 = ssub.s32 %s30, %s37
    %p90 = scmp.eq.s32.totalorder %s89, 0
    %s92 = sadd.s32 %s91, 1
    %s93 = scalar_select %p90, %s91, %s92
    %p96 = pneg %p90
    %p97 = scmp.eq.s32.totalorder %s22, 3
    %p98 = por %p96, %p97
    %p99 = scmp.ne.s32.totalorder %s91, %s94
    %p100 = scmp.eq.s32.totalorder %s22, 0
    %p101 = por %p99, %p100
    %p102 = scmp.ne.s32.totalorder %s91, %s94
    %p103 = scmp.eq.s32.totalorder %s27, 3
    %p104 = por %p102, %p103
    %p105 = scmp.ne.s32.totalorder %s94, %s95
    %p106 = scmp.eq.s32.totalorder %s27, 0
    %p107 = por %p105, %p106
    %p108 = scmp.ne.s32.totalorder %s94, %s95
    %p109 = scmp.eq.s32.totalorder %s28, 3
    %p110 = por %p108, %p109
    %p112 = scmp.ne.s32.totalorder %s95, %s111
    %p113 = scmp.eq.s32.totalorder %s28, 0
    %p114 = por %p112, %p113
    %s115 = ssub.s32 %s30, %s37
    %p116 = scmp.eq.s32.totalorder %s115, 0
    %s118 = sadd.s32 %s117, 1
    %s119 = scalar_select %p116, %s117, %s118
    %p122 = pneg %p116
    %p123 = scmp.eq.s32.totalorder %s22, 3
    %p124 = por %p122, %p123
    %p125 = scmp.ne.s32.totalorder %s117, %s120
    %p126 = scmp.eq.s32.totalorder %s22, 0
    %p127 = por %p125, %p126
    %p128 = scmp.ne.s32.totalorder %s117, %s120
    %p129 = scmp.eq.s32.totalorder %s27, 3
    %p130 = por %p128, %p129
    %p131 = scmp.ne.s32.totalorder %s120, %s121
    %p132 = scmp.eq.s32.totalorder %s27, 0
    %p133 = por %p131, %p132
    %p134 = scmp.ne.s32.totalorder %s120, %s121
    %p135 = scmp.eq.s32.totalorder %s28, 3
    %p136 = por %p134, %p135
    %p138 = scmp.ne.s32.totalorder %s121, %s137
    %p139 = scmp.eq.s32.totalorder %s28, 0
    %p140 = por %p138, %p139
    %s141 = ssub.s32 %s30, %s37
    %p142 = scmp.eq.s32.totalorder %s141, 0
    %s144 = sadd.s32 %s143, 1
    %s145 = scalar_select %p142, %s143, %s144
    %p148 = pneg %p142
    %p149 = scmp.eq.s32.totalorder %s22, 3
    %p150 = por %p148, %p149
    %p151 = scmp.ne.s32.totalorder %s143, %s146
    %p152 = scmp.eq.s32.totalorder %s22, 0
    %p153 = por %p151, %p152
    %p154 = scmp.ne.s32.totalorder %s143, %s146
    %p155 = scmp.eq.s32.totalorder %s27, 3
    %p156 = por %p154, %p155
    %p157 = scmp.ne.s32.totalorder %s146, %s147
    %p158 = scmp.eq.s32.totalorder %s27, 0
    %p159 = por %p157, %p158
    %p160 = scmp.ne.s32.totalorder %s146, %s147
    %p161 = scmp.eq.s32.totalorder %s28, 3
    %p162 = por %p160, %p161
    %p164 = scmp.ne.s32.totalorder %s147, %s163
    %p165 = scmp.eq.s32.totalorder %s28, 0
    %p166 = por %p164, %p165
    %s167 = ssub.s32 %s30, %s37
    %p168 = scmp.eq.s32.totalorder %s167, 0
    %s170 = sadd.s32 %s169, 1
    %s171 = scalar_select %p168, %s169, %s170
    %p174 = pneg %p168
    %p175 = scmp.eq.s32.totalorder %s22, 3
    %p176 = por %p174, %p175
    %p177 = scmp.ne.s32.totalorder %s169, %s172
    %p178 = scmp.eq.s32.totalorder %s22, 0
    %p179 = por %p177, %p178
    %p180 = scmp.ne.s32.totalorder %s169, %s172
    %p181 = scmp.eq.s32.totalorder %s27, 3
    %p182 = por %p180, %p181
    %p183 = scmp.ne.s32.totalorder %s172, %s173
    %p184 = scmp.eq.s32.totalorder %s27, 0
    %p185 = por %p183, %p184
    %p186 = scmp.ne.s32.totalorder %s172, %s173
    %p187 = scmp.eq.s32.totalorder %s28, 3
    %p188 = por %p186, %p187
    %p190 = scmp.ne.s32.totalorder %s173, %s189
    %p191 = scmp.eq.s32.totalorder %s28, 0
    %p192 = por %p190, %p191
    %s193 = ssub.s32 %s30, %s37
    %p194 = scmp.eq.s32.totalorder %s193, 0
    %s196 = sadd.s32 %s195, 1
    %s197 = scalar_select %p194, %s195, %s196
    %p200 = pneg %p194
    %p201 = scmp.eq.s32.totalorder %s22, 3
    %p202 = por %p200, %p201
    %p203 = scmp.ne.s32.totalorder %s195, %s198
    %p204 = scmp.eq.s32.totalorder %s22, 0
    %p205 = por %p203, %p204
    %p206 = scmp.ne.s32.totalorder %s195, %s198
    %p207 = scmp.eq.s32.totalorder %s27, 3
    %p208 = por %p206, %p207
    %p209 = scmp.ne.s32.totalorder %s198, %s199
    %p210 = scmp.eq.s32.totalorder %s27, 0
    %p211 = por %p209, %p210
    %p212 = scmp.ne.s32.totalorder %s198, %s199
    %p213 = scmp.eq.s32.totalorder %s28, 3
    %p214 = por %p212, %p213
    %p216 = scmp.ne.s32.totalorder %s199, %s215
    %p217 = scmp.eq.s32.totalorder %s28, 0
    %p218 = por %p216, %p217
    %s219 = ssub.s32 %s30, %s37
    %p220 = scmp.eq.s32.totalorder %s219, 0
    %s222 = sadd.s32 %s221, 1
    %s223 = scalar_select %p220, %s221, %s222
    %p226 = pneg %p220
    %p227 = scmp.eq.s32.totalorder %s22, 3
    %p228 = por %p226, %p227
    %p229 = scmp.ne.s32.totalorder %s221, %s224
    %p230 = scmp.eq.s32.totalorder %s22, 0
    %p231 = por %p229, %p230
    %p232 = scmp.ne.s32.totalorder %s221, %s224
    %p233 = scmp.eq.s32.totalorder %s27, 3
    %p234 = por %p232, %p233
    %p235 = scmp.ne.s32.totalorder %s224, %s225
    %p236 = scmp.eq.s32.totalorder %s27, 0
    %p237 = por %p235, %p236
    %p238 = scmp.ne.s32.totalorder %s224, %s225
    %p239 = scmp.eq.s32.totalorder %s28, 3
    %p240 = por %p238, %p239
    %p242 = scmp.ne.s32.totalorder %s225, %s241
    %p243 = scmp.eq.s32.totalorder %s28, 0
    %p244 = por %p242, %p243
    %s245 = ssub.s32 %s30, %s37
    %p246 = scmp.eq.s32.totalorder %s245, 0
    %s248 = sadd.s32 %s247, 1
    %s249 = scalar_select %p246, %s247, %s248
    %p252 = pneg %p246
    %p253 = scmp.eq.s32.totalorder %s22, 3
    %p254 = por %p252, %p253
    %p255 = scmp.ne.s32.totalorder %s247, %s250
    %p256 = scmp.eq.s32.totalorder %s22, 0
    %p257 = por %p255, %p256
    %p258 = scmp.ne.s32.totalorder %s247, %s250
    %p259 = scmp.eq.s32.totalorder %s27, 3
    %p260 = por %p258, %p259
    %p261 = scmp.ne.s32.totalorder %s250, %s251
    %p262 = scmp.eq.s32.totalorder %s27, 0
    %p263 = por %p261, %p262
    %p264 = scmp.ne.s32.totalorder %s250, %s251
    %p265 = scmp.eq.s32.totalorder %s28, 3
    %p266 = por %p264, %p265
    %p268 = scmp.ne.s32.totalorder %s251, %s267
    %p269 = scmp.eq.s32.totalorder %s28, 0
    %p270 = por %p268, %p269
    %s271 = ssub.s32 %s30, %s37
    %p272 = scmp.eq.s32.totalorder %s271, 0
    %s274 = sadd.s32 %s273, 1
    %s275 = scalar_select %p272, %s273, %s274
    %p278 = pneg %p272
    %p279 = scmp.eq.s32.totalorder %s22, 3
    %p280 = por %p278, %p279
    %p281 = scmp.ne.s32.totalorder %s273, %s276
    %p282 = scmp.eq.s32.totalorder %s22, 0
    %p283 = por %p281, %p282
    %p284 = scmp.ne.s32.totalorder %s273, %s276
    %p285 = scmp.eq.s32.totalorder %s27, 3
    %p286 = por %p284, %p285
    %p287 = scmp.ne.s32.totalorder %s276, %s277
    %p288 = scmp.eq.s32.totalorder %s27, 0
    %p289 = por %p287, %p288
    %p290 = scmp.ne.s32.totalorder %s276, %s277
    %p291 = scmp.eq.s32.totalorder %s28, 3
    %p292 = por %p290, %p291
    %p294 = scmp.ne.s32.totalorder %s277, %s293
    %p295 = scmp.eq.s32.totalorder %s28, 0
    %p296 = por %p294, %p295
    %s297 = ssub.s32 %s30, %s37
    %p298 = scmp.eq.s32.totalorder %s297, 0
    %s300 = sadd.s32 %s299, 1
    %s301 = scalar_select %p298, %s299, %s300
    %p304 = pneg %p298
    %p305 = scmp.eq.s32.totalorder %s22, 3
    %p306 = por %p304, %p305
    %p307 = scmp.ne.s32.totalorder %s299, %s302
    %p308 = scmp.eq.s32.totalorder %s22, 0
    %p309 = por %p307, %p308
    %p310 = scmp.ne.s32.totalorder %s299, %s302
    %p311 = scmp.eq.s32.totalorder %s27, 3
    %p312 = por %p310, %p311
    %p313 = scmp.ne.s32.totalorder %s302, %s303
    %p314 = scmp.eq.s32.totalorder %s27, 0
    %p315 = por %p313, %p314
    %p316 = scmp.ne.s32.totalorder %s302, %s303
    %p317 = scmp.eq.s32.totalorder %s28, 3
    %p318 = por %p316, %p317
    %p320 = scmp.ne.s32.totalorder %s303, %s319
    %p321 = scmp.eq.s32.totalorder %s28, 0
    %p322 = por %p320, %p321
    %s323 = ssub.s32 %s30, %s37
    %p324 = scmp.eq.s32.totalorder %s323, 0
    %s326 = sadd.s32 %s325, 1
    %s327 = scalar_select %p324, %s325, %s326
    %p330 = pneg %p324
    %p331 = scmp.eq.s32.totalorder %s22, 3
    %p332 = por %p330, %p331
    %p333 = scmp.ne.s32.totalorder %s325, %s328
    %p334 = scmp.eq.s32.totalorder %s22, 0
    %p335 = por %p333, %p334
    %p336 = scmp.ne.s32.totalorder %s325, %s328
    %p337 = scmp.eq.s32.totalorder %s27, 3
    %p338 = por %p336, %p337
    %p339 = scmp.ne.s32.totalorder %s328, %s329
    %p340 = scmp.eq.s32.totalorder %s27, 0
    %p341 = por %p339, %p340
    %p342 = scmp.ne.s32.totalorder %s328, %s329
    %p343 = scmp.eq.s32.totalorder %s28, 3
    %p344 = por %p342, %p343
    %p346 = scmp.ne.s32.totalorder %s329, %s345
    %p347 = scmp.eq.s32.totalorder %s28, 0
    %p348 = por %p346, %p347
    %s349 = ssub.s32 %s30, %s37
    %p350 = scmp.eq.s32.totalorder %s349, 0
    %s352 = sadd.s32 %s351, 1
    %s353 = scalar_select %p350, %s351, %s352
    %p356 = pneg %p350
    %p357 = scmp.eq.s32.totalorder %s22, 3
    %p358 = por %p356, %p357
    %p359 = scmp.ne.s32.totalorder %s351, %s354
    %p360 = scmp.eq.s32.totalorder %s22, 0
    %p361 = por %p359, %p360
    %p362 = scmp.ne.s32.totalorder %s351, %s354
    %p363 = scmp.eq.s32.totalorder %s27, 3
    %p364 = por %p362, %p363
    %p365 = scmp.ne.s32.totalorder %s354, %s355
    %p366 = scmp.eq.s32.totalorder %s27, 0
    %p367 = por %p365, %p366
    %p368 = scmp.ne.s32.totalorder %s354, %s355
    %p369 = scmp.eq.s32.totalorder %s28, 3
    %p370 = por %p368, %p369
    %p372 = scmp.ne.s32.totalorder %s355, %s371
    %p373 = scmp.eq.s32.totalorder %s28, 0
    %p374 = por %p372, %p373
    %s375 = ssub.s32 %s30, %s37
    %p376 = scmp.eq.s32.totalorder %s375, 0
    %s378 = sadd.s32 %s377, 1
    %s379 = scalar_select %p376, %s377, %s378
    %p382 = pneg %p376
    %p383 = scmp.eq.s32.totalorder %s22, 3
    %p384 = por %p382, %p383
    %p385 = scmp.ne.s32.totalorder %s377, %s380
    %p386 = scmp.eq.s32.totalorder %s22, 0
    %p387 = por %p385, %p386
    %p388 = scmp.ne.s32.totalorder %s377, %s380
    %p389 = scmp.eq.s32.totalorder %s27, 3
    %p390 = por %p388, %p389
    %p391 = scmp.ne.s32.totalorder %s380, %s381
    %p392 = scmp.eq.s32.totalorder %s27, 0
    %p393 = por %p391, %p392
    %p394 = scmp.ne.s32.totalorder %s380, %s381
    %p395 = scmp.eq.s32.totalorder %s28, 3
    %p396 = por %p394, %p395
    %p398 = scmp.ne.s32.totalorder %s381, %s397
    %p399 = scmp.eq.s32.totalorder %s28, 0
    %p400 = por %p398, %p399
    %s402 = sadd.s32 %s401, 1
    %p405 = scmp.eq.s32.totalorder %s22, 3
    %p406 = scmp.ne.s32.totalorder %s401, %s403
    %p407 = scmp.eq.s32.totalorder %s22, 0
    %p408 = por %p406, %p407
    %p409 = scmp.ne.s32.totalorder %s401, %s403
    %p410 = scmp.eq.s32.totalorder %s27, 3
    %p411 = por %p409, %p410
    %p412 = scmp.ne.s32.totalorder %s403, %s404
    %p413 = scmp.eq.s32.totalorder %s27, 0
    %p414 = por %p412, %p413
    %p415 = scmp.ne.s32.totalorder %s403, %s404
    %p416 = scmp.eq.s32.totalorder %s28, 3
    %p417 = por %p415, %p416
    %p419 = scmp.ne.s32.totalorder %s404, %s418
    %p420 = scmp.eq.s32.totalorder %s28, 0
    %p421 = por %p419, %p420
    %s423 = sadd.s32 %s422, 1
    %p426 = scmp.eq.s32.totalorder %s22, 3
    %p427 = scmp.ne.s32.totalorder %s422, %s424
    %p428 = scmp.eq.s32.totalorder %s22, 0
    %p429 = por %p427, %p428
    %p430 = scmp.ne.s32.totalorder %s422, %s424
    %p431 = scmp.eq.s32.totalorder %s27, 3
    %p432 = por %p430, %p431
    %p433 = scmp.ne.s32.totalorder %s424, %s425
    %p434 = scmp.eq.s32.totalorder %s27, 0
    %p435 = por %p433, %p434
    %p436 = scmp.ne.s32.totalorder %s424, %s425
    %p437 = scmp.eq.s32.totalorder %s28, 3
    %p438 = por %p436, %p437
    %p440 = scmp.ne.s32.totalorder %s425, %s439
    %p441 = scmp.eq.s32.totalorder %s28, 0
    %p442 = por %p440, %p441
    %s443 = ssub.s32 %s29, %s41
    %p444 = scmp.eq.s32.totalorder %s443, 0
    %s446 = sadd.s32 %s445, 1
    %s447 = scalar_select %p444, %s445, %s446
    %p450 = pneg %p444
    %p451 = scmp.eq.s32.totalorder %s22, 3
    %p452 = por %p450, %p451
    %p453 = scmp.ne.s32.totalorder %s445, %s448
    %p454 = scmp.eq.s32.totalorder %s22, 0
    %p455 = por %p453, %p454
    %p456 = scmp.ne.s32.totalorder %s445, %s448
    %p457 = scmp.eq.s32.totalorder %s27, 3
    %p458 = por %p456, %p457
    %p459 = scmp.ne.s32.totalorder %s448, %s449
    %p460 = scmp.eq.s32.totalorder %s27, 0
    %p461 = por %p459, %p460
    %p462 = scmp.ne.s32.totalorder %s448, %s449
    %p463 = scmp.eq.s32.totalorder %s28, 3
    %p464 = por %p462, %p463
    %p466 = scmp.ne.s32.totalorder %s449, %s465
    %p467 = scmp.eq.s32.totalorder %s28, 0
    %p468 = por %p466, %p467
    %p469 = scmp.le.s32.totalorder 1, %s22
    %p470 = scmp.lt.s32.totalorder %s22, 5
    %p471 = pnand %p469, %p470
    %p472 = pneg %p471
    // Predicated region
    $region9: #{transformer_forward.1} parent=5 // pred_check
      _
    $region10: #{transformer_forward.1} parent=5 // pred_check_branch
      %474 = sbr.rel (%p471) target = $region12
    $region11: #{transformer_forward.1} parent=5 // pred_region
      %s475 = ssub.s32 %s22, 1
      // Predicated region
      $region13: #{transformer_forward.1} parent=11 // pred_check
        %p476 = pneg %p81
      $region14: #{transformer_forward.1} parent=11 // pred_check_branch
        %478 = sbr.rel (%p476) target = $region16
      $region15: #{transformer_forward.1} parent=11 // pred_region
        _
      $region16: #{transformer_forward.1} parent=11 // pred_fallthru
        _
      // Predicated region
      $region17: #{transformer_forward.1} parent=11 // pred_check
        %p479 = pneg %p414
      $region18: #{transformer_forward.1} parent=11 // pred_check_branch
        %481 = sbr.rel (%p479) target = $region20
      $region19: #{transformer_forward.1} parent=11 // pred_region
        _
      $region20: #{transformer_forward.1} parent=11 // pred_fallthru
        _
      // Predicated region
      $region21: #{transformer_forward.1} parent=11 // pred_check
        %p482 = pneg %p435
      $region22: #{transformer_forward.1} parent=11 // pred_check_branch
        %484 = sbr.rel (%p482) target = $region24
      $region23: #{transformer_forward.1} parent=11 // pred_region
        _
      $region24: #{transformer_forward.1} parent=11 // pred_fallthru
        _
    $region12: #{transformer_forward.1} parent=5 // pred_fallthru
      _
    %p485 = scmp.lt.s32.totalorder %s22, 4
    // Predicated region
    $region25: #{transformer_forward.1} parent=5 // pred_check
      %p486 = pneg %p485
    $region26: #{transformer_forward.1} parent=5 // pred_check_branch
      %488 = sbr.rel (%p486) target = $region28
    $region27: #{transformer_forward.1} parent=5 // pred_region
      // Predicated region
      $region29: #{transformer_forward.1} parent=27 // pred_check
        %p489 = pneg %p54
      $region30: #{transformer_forward.1} parent=27 // pred_check_branch
        %491 = sbr.rel (%p489) target = $region32
      $region31: #{transformer_forward.1} parent=27 // pred_region
        %p492 = scmp.lt.s32.totalorder %s29, 1
        %s493 = scalar_select %p492, %s29, 1
        %s494 = smul.addr %s493, 8
        %s495 = scalar_lea.vmem %s0, %s494
      $region32: #{transformer_forward.1} parent=27 // pred_fallthru
        _
      // Predicated region
      $region33: #{transformer_forward.1} parent=27 // pred_check
        %p496 = pneg %p101
      $region34: #{transformer_forward.1} parent=27 // pred_check_branch
        %498 = sbr.rel (%p496) target = $region36
      $region35: #{transformer_forward.1} parent=27 // pred_region
        %p499 = scmp.lt.s32.totalorder %s30, 1
        %s500 = scalar_select %p499, %s30, 1
        %s501 = smul.addr %s500, 4
        %s502 = smul.addr %s501, 4
        %s503 = scalar_lea.vmem %s2, %s502
      $region36: #{transformer_forward.1} parent=27 // pred_fallthru
        _
      // Predicated region
      $region37: #{transformer_forward.1} parent=27 // pred_check
        %p504 = pneg %p127
      $region38: #{transformer_forward.1} parent=27 // pred_check_branch
        %506 = sbr.rel (%p504) target = $region40
      $region39: #{transformer_forward.1} parent=27 // pred_region
        %p507 = scmp.lt.s32.totalorder %s30, 1
        %s508 = scalar_select %p507, %s30, 1
        %s509 = scalar_lea.vmem %s3, %s508
      $region40: #{transformer_forward.1} parent=27 // pred_fallthru
        _
      // Predicated region
      $region41: #{transformer_forward.1} parent=27 // pred_check
        %p510 = pneg %p153
      $region42: #{transformer_forward.1} parent=27 // pred_check_branch
        %512 = sbr.rel (%p510) target = $region44
      $region43: #{transformer_forward.1} parent=27 // pred_region
        %p513 = scmp.lt.s32.totalorder %s30, 1
        %s514 = scalar_select %p513, %s30, 1
        %s515 = smul.addr %s514, 4
        %s516 = smul.addr %s515, 4
        %s517 = scalar_lea.vmem %s4, %s516
      $region44: #{transformer_forward.1} parent=27 // pred_fallthru
        _
      // Predicated region
      $region45: #{transformer_forward.1} parent=27 // pred_check
        %p518 = pneg %p179
      $region46: #{transformer_forward.1} parent=27 // pred_check_branch
        %520 = sbr.rel (%p518) target = $region48
      $region47: #{transformer_forward.1} parent=27 // pred_region
        %p521 = scmp.lt.s32.totalorder %s30, 1
        %s522 = scalar_select %p521, %s30, 1
        %s523 = scalar_lea.vmem %s5, %s522
      $region48: #{transformer_forward.1} parent=27 // pred_fallthru
        _
      // Predicated region
      $region49: #{transformer_forward.1} parent=27 // pred_check
        %p524 = pneg %p205
      $region50: #{transformer_forward.1} parent=27 // pred_check_branch
        %526 = sbr.rel (%p524) target = $region52
      $region51: #{transformer_forward.1} parent=27 // pred_region
        %p527 = scmp.lt.s32.totalorder %s30, 1
        %s528 = scalar_select %p527, %s30, 1
        %s529 = scalar_lea.vmem %s6, %s528
      $region52: #{transformer_forward.1} parent=27 // pred_fallthru
        _
      // Predicated region
      $region53: #{transformer_forward.1} parent=27 // pred_check
        %p530 = pneg %p231
      $region54: #{transformer_forward.1} parent=27 // pred_check_branch
        %532 = sbr.rel (%p530) target = $region56
      $region55: #{transformer_forward.1} parent=27 // pred_region
        %p533 = scmp.lt.s32.totalorder %s30, 1
        %s534 = scalar_select %p533, %s30, 1
        %s535 = scalar_lea.vmem %s7, %s534
      $region56: #{transformer_forward.1} parent=27 // pred_fallthru
        _
      // Predicated region
      $region57: #{transformer_forward.1} parent=27 // pred_check
        %p536 = pneg %p257
      $region58: #{transformer_forward.1} parent=27 // pred_check_branch
        %538 = sbr.rel (%p536) target = $region60
      $region59: #{transformer_forward.1} parent=27 // pred_region
        %p539 = scmp.lt.s32.totalorder %s30, 1
        %s540 = scalar_select %p539, %s30, 1
        %s541 = smul.addr %s540, 4
        %s542 = smul.addr %s541, 4
        %s543 = scalar_lea.vmem %s8, %s542
      $region60: #{transformer_forward.1} parent=27 // pred_fallthru
        _
      // Predicated region
      $region61: #{transformer_forward.1} parent=27 // pred_check
        %p544 = pneg %p283
      $region62: #{transformer_forward.1} parent=27 // pred_check_branch
        %546 = sbr.rel (%p544) target = $region64
      $region63: #{transformer_forward.1} parent=27 // pred_region
        %p547 = scmp.lt.s32.totalorder %s30, 1
        %s548 = scalar_select %p547, %s30, 1
        %s549 = scalar_lea.vmem %s9, %s548
      $region64: #{transformer_forward.1} parent=27 // pred_fallthru
        _
      // Predicated region
      $region65: #{transformer_forward.1} parent=27 // pred_check
        %p550 = pneg %p309
      $region66: #{transformer_forward.1} parent=27 // pred_check_branch
        %552 = sbr.rel (%p550) target = $region68
      $region67: #{transformer_forward.1} parent=27 // pred_region
        %p553 = scmp.lt.s32.totalorder %s30, 1
        %s554 = scalar_select %p553, %s30, 1
        %s555 = smul.addr %s554, 16
        %s556 = smul.addr %s555, 4
        %s557 = scalar_lea.vmem %s10, %s556
      $region68: #{transformer_forward.1} parent=27 // pred_fallthru
        _
      // Predicated region
      $region69: #{transformer_forward.1} parent=27 // pred_check
        %p558 = pneg %p335
      $region70: #{transformer_forward.1} parent=27 // pred_check_branch
        %560 = sbr.rel (%p558) target = $region72
      $region71: #{transformer_forward.1} parent=27 // pred_region
        %p561 = scmp.lt.s32.totalorder %s30, 1
        %s562 = scalar_select %p561, %s30, 1
        %s563 = scalar_lea.vmem %s11, %s562
      $region72: #{transformer_forward.1} parent=27 // pred_fallthru
        _
      // Predicated region
      $region73: #{transformer_forward.1} parent=27 // pred_check
        %p564 = pneg %p361
      $region74: #{transformer_forward.1} parent=27 // pred_check_branch
        %566 = sbr.rel (%p564) target = $region76
      $region75: #{transformer_forward.1} parent=27 // pred_region
        %p567 = scmp.lt.s32.totalorder %s30, 1
        %s568 = scalar_select %p567, %s30, 1
        %s569 = scalar_lea.vmem %s12, %s568
      $region76: #{transformer_forward.1} parent=27 // pred_fallthru
        _
      // Predicated region
      $region77: #{transformer_forward.1} parent=27 // pred_check
        %p570 = pneg %p387
      $region78: #{transformer_forward.1} parent=27 // pred_check_branch
        %572 = sbr.rel (%p570) target = $region80
      $region79: #{transformer_forward.1} parent=27 // pred_region
        %p573 = scmp.lt.s32.totalorder %s30, 1
        %s574 = scalar_select %p573, %s30, 1
        %s575 = scalar_lea.vmem %s13, %s574
      $region80: #{transformer_forward.1} parent=27 // pred_fallthru
        _
    $region28: #{transformer_forward.1} parent=5 // pred_fallthru
      _
    %p576 = scmp.le.s32.totalorder 1, %s22
    %p577 = scmp.lt.s32.totalorder %s22, 5
    %p578 = pnand %p576, %p577
    %p579 = pneg %p578
    // Predicated region
    $region81: #{transformer_forward.1} parent=5 // pred_check
      _
    $region82: #{transformer_forward.1} parent=5 // pred_check_branch
      %581 = sbr.rel (%p578) target = $region84
    $region83: #{transformer_forward.1} parent=5 // pred_region
      %s582 = ssub.s32 %s22, 1
      %p583 = scmp.lt.s32.totalorder %s31, 1
      %s584 = scalar_select %p583, %s31, 1
      %s585 = smul.addr %s584, 8
      %s586 = scalar_lea.vmem %s0, %s585
      %p587 = pneg %p60
      %p588 = pneg %p57
      %p589 = pneg %p81
      %p590 = pneg %p78
      %p591 = scmp.lt.s32.totalorder %s32, 1
      %s592 = scalar_select %p591, %s32, 1
      %s593 = smul.addr %s592, 4
      %s594 = smul.addr %s593, 4
      %s595 = scalar_lea.vmem %s2, %s594
      %p596 = pneg %p107
      %p597 = pneg %p104
      %p598 = scmp.lt.s32.totalorder %s32, 1
      %s599 = scalar_select %p598, %s32, 1
      %s600 = scalar_lea.vmem %s3, %s599
      %p601 = pneg %p133
      %p602 = pneg %p130
      %p603 = scmp.lt.s32.totalorder %s32, 1
      %s604 = scalar_select %p603, %s32, 1
      %s605 = smul.addr %s604, 4
      %s606 = smul.addr %s605, 4
      %s607 = scalar_lea.vmem %s4, %s606
      %p608 = pneg %p159
      %p609 = pneg %p156
      %p610 = scmp.lt.s32.totalorder %s32, 1
      %s611 = scalar_select %p610, %s32, 1
      %s612 = scalar_lea.vmem %s5, %s611
      %p613 = pneg %p185
      %p614 = pneg %p182
      %p615 = scmp.lt.s32.totalorder %s32, 1
      %s616 = scalar_select %p615, %s32, 1
      %s617 = scalar_lea.vmem %s6, %s616
      %p618 = pneg %p211
      %p619 = pneg %p208
      %p620 = scmp.lt.s32.totalorder %s32, 1
      %s621 = scalar_select %p620, %s32, 1
      %s622 = scalar_lea.vmem %s7, %s621
      %p623 = pneg %p237
      %p624 = pneg %p234
      %p625 = scmp.lt.s32.totalorder %s32, 1
      %s626 = scalar_select %p625, %s32, 1
      %s627 = smul.addr %s626, 4
      %s628 = smul.addr %s627, 4
      %s629 = scalar_lea.vmem %s8, %s628
      %p630 = pneg %p263
      %p631 = pneg %p260
      %p632 = scmp.lt.s32.totalorder %s32, 1
      %s633 = scalar_select %p632, %s32, 1
      %s634 = scalar_lea.vmem %s9, %s633
      %p635 = pneg %p289
      %p636 = pneg %p286
      %p637 = scmp.lt.s32.totalorder %s32, 1
      %s638 = scalar_select %p637, %s32, 1
      %s639 = smul.addr %s638, 16
      %s640 = smul.addr %s639, 4
      %s641 = scalar_lea.vmem %s10, %s640
      %p642 = pneg %p315
      %p643 = pneg %p312
      %p644 = scmp.lt.s32.totalorder %s32, 1
      %s645 = scalar_select %p644, %s32, 1
      %s646 = scalar_lea.vmem %s11, %s645
      %p647 = pneg %p341
      %p648 = pneg %p338
      %p649 = scmp.lt.s32.totalorder %s32, 1
      %s650 = scalar_select %p649, %s32, 1
      %s651 = scalar_lea.vmem %s12, %s650
      %p652 = pneg %p367
      %p653 = pneg %p364
      %p654 = scmp.lt.s32.totalorder %s32, 1
      %s655 = scalar_select %p654, %s32, 1
      %s656 = scalar_lea.vmem %s13, %s655
      %p657 = pneg %p393
      %p658 = pneg %p390
      %p659 = pneg %p414
      %p660 = pneg %p411
      %p661 = pneg %p435
      %p662 = pneg %p432
      %p663 = pneg %p461
      %p664 = pneg %p458
      %p665 = scmp.lt.s32.totalorder %s31, 1
      %s666 = scalar_select %p665, %s31, 1
      %s667 = smul.addr %s666, 8
      %s668 = scalar_lea.vmem %s16, %s667
      %p669 = scmp.lt.s32.totalorder %s31, 1
      %s670 = scalar_select %p669, %s31, 1
      %s671 = smul.addr %s670, 8
      %s672 = scalar_lea.vmem %s0, %s671
      %p673 = scmp.lt.s32.totalorder %s32, 1
      %s674 = scalar_select %p673, %s32, 1
      %s675 = smul.addr %s674, 4
      %s676 = smul.addr %s675, 4
      %s677 = scalar_lea.vmem %s2, %s676
      %p678 = scmp.lt.s32.totalorder %s32, 1
      %s679 = scalar_select %p678, %s32, 1
      %s680 = scalar_lea.vmem %s3, %s679
      %p681 = scmp.lt.s32.totalorder %s32, 1
      %s682 = scalar_select %p681, %s32, 1
      %s683 = smul.addr %s682, 4
      %s684 = smul.addr %s683, 4
      %s685 = scalar_lea.vmem %s4, %s684
      %p686 = scmp.lt.s32.totalorder %s32, 1
      %s687 = scalar_select %p686, %s32, 1
      %s688 = scalar_lea.vmem %s5, %s687
      %p689 = scmp.lt.s32.totalorder %s32, 1
      %s690 = scalar_select %p689, %s32, 1
      %s691 = scalar_lea.vmem %s6, %s690
      %p692 = scmp.lt.s32.totalorder %s32, 1
      %s693 = scalar_select %p692, %s32, 1
      %s694 = scalar_lea.vmem %s7, %s693
      %p695 = scmp.lt.s32.totalorder %s32, 1
      %s696 = scalar_select %p695, %s32, 1
      %s697 = smul.addr %s696, 4
      %s698 = smul.addr %s697, 4
      %s699 = scalar_lea.vmem %s8, %s698
      %p700 = scmp.lt.s32.totalorder %s32, 1
      %s701 = scalar_select %p700, %s32, 1
      %s702 = scalar_lea.vmem %s9, %s701
      %p703 = scmp.lt.s32.totalorder %s32, 1
      %s704 = scalar_select %p703, %s32, 1
      %s705 = smul.addr %s704, 16
      %s706 = smul.addr %s705, 4
      %s707 = scalar_lea.vmem %s10, %s706
      %p708 = scmp.lt.s32.totalorder %s32, 1
      %s709 = scalar_select %p708, %s32, 1
      %s710 = scalar_lea.vmem %s11, %s709
      %p711 = scmp.lt.s32.totalorder %s32, 1
      %s712 = scalar_select %p711, %s32, 1
      %s713 = scalar_lea.vmem %s12, %s712
      %p714 = scmp.lt.s32.totalorder %s32, 1
      %s715 = scalar_select %p714, %s32, 1
      %s716 = scalar_lea.vmem %s13, %s715
      %p717 = scmp.lt.s32.totalorder %s31, 1
      %s718 = scalar_select %p717, %s31, 1
      %s719 = smul.addr %s718, 8
      %s720 = scalar_lea.vmem %s16, %s719
      %p722 = scmp.eq.s32.totalorder %s32, 0
      // Predicated region
      $region85: #{transformer_forward.1} parent=83 // pred_check
        %p723 = pneg %p722
      $region86: #{transformer_forward.1} parent=83 // pred_check_branch
        %725 = sbr.rel (%p723) target = $region88
      $region87: #{transformer_forward.1} parent=83 // pred_region
        %v726 = vld [vmem:[%s1] sm:$0xff]
        %v727 = vld [vmem:[%s672] sm:$0xff]
        %v728 = vadd.f32 %v727, %v726
        %vm729 = vcmask 261120
        %730 = vst.msk [vmem:[#allocation2] sm:$0xff] %vm729, %v728
      $region88: #{transformer_forward.1} parent=83 // pred_fallthru
        _
      %v731 = vld [vmem:[#allocation2] sm:$0xff]
      %v732 = vpack.c.bf16 %v731, %v731
      %v733 = vld [vmem:[%s677] sm:$0xf]
      %v734 = vld [vmem:[%s677 + $0x4] sm:$0xf]
      %v735 = vld [vmem:[%s677 + $0x8] sm:$0xf]
      %v736 = vld [vmem:[%s677 + $0xc] sm:$0xf]
      %v737 = vld [vmem:[%s680] sm:$0x1]
      %v739 = vlaneseq
      %v740 = vshrl.u32 %v739, 7
      %v741 = vsub.s32 0, %v740
      %v742 = vrot.slane %v737, %v741
      %v748 = vunpack.c.l.b16 %v733
      %v749 = vunpack.c.l.b16 %v734
      %v750 = vunpack.c.l.b16 %v735
      %v751 = vunpack.c.l.b16 %v736
      %v752 = vpack.c.b16 %v749, %v748
      %v753 = vpack.c.b16 %v751, %v750
      %vm756 = vcmask 261120
      %v758 = vsel %vm756, %v732, 0
      %760 = vmatprep.subr.bf16.mxu0 0
      %761 = vmatpush1.bf16.msra.mxu0 0
      %762 = vmatprep.subr.bf16.mxu0 0
      %763 = vmatpush1.bf16.msra.mxu0 0
      %764 = vmatprep.subr.bf16.mxu0 0
      %765 = vmatpush1.bf16.msra.mxu0 0
      %766 = vmatprep.subr.bf16.mxu0 0
      %767 = vmatpush1.bf16.msra.mxu0 0
      %768 = vmatprep.subr.bf16.mxu0 0
      %769 = vmatpush1.bf16.msra.mxu0 0
      %770 = vmatprep.subr.bf16.mxu0 0
      %771 = vmatpush1.bf16.msra.mxu0 0
      %772 = vmatprep.subr.bf16.mxu0 0
      %773 = vmatpush1.bf16.msra.mxu0 %v753
      %774 = vmatprep.subr.bf16.mxu0 0
      %775 = vmatpush1.bf16.msra.mxu0 %v752
      %776 = vmatprep.subr.bf16.mxu0 0
      %777 = vmatpush2.bf16.msra.mxu0 0
      %778 = vmatprep.subr.bf16.mxu0 0
      %779 = vmatpush2.bf16.msra.mxu0 0
      %780 = vmatprep.subr.bf16.mxu0 0
      %781 = vmatpush2.bf16.msra.mxu0 0
      %782 = vmatprep.subr.bf16.mxu0 0
      %783 = vmatpush2.bf16.msra.mxu0 0
      %784 = vmatprep.subr.bf16.mxu0 0
      %785 = vmatpush2.bf16.msra.mxu0 0
      %786 = vmatprep.subr.bf16.mxu0 0
      %787 = vmatpush2.bf16.msra.mxu0 0
      %788 = vmatprep.subr.bf16.mxu0 0
      %789 = vmatpush2.bf16.msra.mxu0 0
      %790 = vmatprep.subr.bf16.mxu0 0
      %791 = vmatpush2.bf16.msra.mxu0 0
      %792 = vmatprep.mubr.bf16.mxu0 0
      %793 = vmatmul.mubr.bf16.gmra.mxu0 %v758
      %v794 = vpop.f32.mrf.mxu0
      %v795 = vadd.f32 %v742, %v794
      %v796 = vpop.f32.mrf.mxu0
      %v797 = vpop.f32.mrf.mxu0
      %v798 = vpop.f32.mrf.mxu0
      %799 = vdwg.mxu0
      %v800 = vpack.c.bf16 %v795, %v795
      %802 = vrot.lane.b32.xlu0 %v800, 96
      %v803 = vpop.permute.xlu0 %802
      %vm804 = vcmask 64512
      %v806 = vsel %vm804, %v800, 0
      %v809 = vsel %vm804, %v803, 0
      %811 = vmatprep.subr.bf16.mxu0 0
      %812 = vmatpush1.bf16.xpose.msra.mxu0 0
      %813 = vmatprep.subr.bf16.mxu0 0
      %814 = vmatpush1.bf16.xpose.msra.mxu0 0
      %815 = vmatprep.subr.bf16.mxu0 0
      %816 = vmatpush1.bf16.xpose.msra.mxu0 0
      %817 = vmatprep.subr.bf16.mxu0 0
      %818 = vmatpush1.bf16.xpose.msra.mxu0 0
      %819 = vmatprep.subr.bf16.mxu0 0
      %820 = vmatpush1.bf16.xpose.msra.mxu0 0
      %821 = vmatprep.subr.bf16.mxu0 0
      %822 = vmatpush1.bf16.xpose.msra.mxu0 0
      %823 = vmatprep.subr.bf16.mxu0 0
      %824 = vmatpush1.bf16.xpose.msra.mxu0 0
      %825 = vmatprep.subr.bf16.mxu0 0
      %826 = vmatpush1.bf16.xpose.msra.mxu0 %v809
      %827 = vmatprep.subr.bf16.mxu0 0
      %828 = vmatpush2.bf16.xpose.msra.mxu0 0
      %829 = vmatprep.subr.bf16.mxu0 0
      %830 = vmatpush2.bf16.xpose.msra.mxu0 0
      %831 = vmatprep.subr.bf16.mxu0 0
      %832 = vmatpush2.bf16.xpose.msra.mxu0 0
      %833 = vmatprep.subr.bf16.mxu0 0
      %834 = vmatpush2.bf16.xpose.msra.mxu0 0
      %835 = vmatprep.subr.bf16.mxu0 0
      %836 = vmatpush2.bf16.xpose.msra.mxu0 0
      %837 = vmatprep.subr.bf16.mxu0 0
      %838 = vmatpush2.bf16.xpose.msra.mxu0 0
      %839 = vmatprep.subr.bf16.mxu0 0
      %840 = vmatpush2.bf16.xpose.msra.mxu0 0
      %841 = vmatprep.subr.bf16.mxu0 0
      %842 = vmatpush2.bf16.xpose.msra.mxu0 0
      %843 = vmatprep.mubr.bf16.mxu0 0
      %844 = vmatmul.mubr.bf16.gmra.mxu0 %v806
      %v845 = vpop.f32.mrf.mxu0
      %v846 = vadd.f32 0.0, %v845
      %v847 = vpop.f32.mrf.mxu0
      %v848 = vpop.f32.mrf.mxu0
      %v849 = vpop.f32.mrf.mxu0
      %850 = vdwg.mxu0
      %v851 = vmul.f32 %v846, 0.35355338
      %v852 = vsel %vm804, %v851, -inf
      %853 = vmax.xlane.f32.xlu0 %v852
      %v854 = vpop.xlane.xlu0 %853
      %v855 = vsub.f32 %v851, %v854
      %v856 = vmul.f32 %v855, 1.442695
      %v857 = vpow.pop %v856
      %v858 = vsel %vm804, %v857, 0.0
      %859 = vadd.xlane.f32.xlu0 %v858
      %v860 = vpop.xlane.xlu0 %859
      %v861 = vrcp.pop %v860
      %v862 = vmul.f32 %v857, %v861
      %v863 = vpack.c.bf16 %v862, %v862
      %864 = vrot.lane.b32.xlu0 %v800, 64
      %v865 = vpop.permute.xlu0 %864
      %v867 = vsel %vm804, %v863, 0
      %vm869 = vcmask 1043456
      %v871 = vsel %vm869, %v865, 0
      %873 = vmatprep.subr.bf16.mxu0 0
      %874 = vmatpush1.bf16.msra.mxu0 0
      %875 = vmatprep.subr.bf16.mxu0 0
      %876 = vmatpush1.bf16.msra.mxu0 0
      %877 = vmatprep.subr.bf16.mxu0 0
      %878 = vmatpush1.bf16.msra.mxu0 0
      %879 = vmatprep.subr.bf16.mxu0 0
      %880 = vmatpush1.bf16.msra.mxu0 0
      %881 = vmatprep.subr.bf16.mxu0 0
      %882 = vmatpush1.bf16.msra.mxu0 0
      %883 = vmatprep.subr.bf16.mxu0 0
      %884 = vmatpush1.bf16.msra.mxu0 0
      %885 = vmatprep.subr.bf16.mxu0 0
      %886 = vmatpush1.bf16.msra.mxu0 0
      %887 = vmatprep.subr.bf16.mxu0 0
      %888 = vmatpush1.bf16.msra.mxu0 %v871
      %889 = vmatprep.subr.bf16.mxu0 0
      %890 = vmatpush2.bf16.msra.mxu0 0
      %891 = vmatprep.subr.bf16.mxu0 0
      %892 = vmatpush2.bf16.msra.mxu0 0
      %893 = vmatprep.subr.bf16.mxu0 0
      %894 = vmatpush2.bf16.msra.mxu0 0
      %895 = vmatprep.subr.bf16.mxu0 0
      %896 = vmatpush2.bf16.msra.mxu0 0
      %897 = vmatprep.subr.bf16.mxu0 0
      %898 = vmatpush2.bf16.msra.mxu0 0
      %899 = vmatprep.subr.bf16.mxu0 0
      %900 = vmatpush2.bf16.msra.mxu0 0
      %901 = vmatprep.subr.bf16.mxu0 0
      %902 = vmatpush2.bf16.msra.mxu0 0
      %903 = vmatprep.subr.bf16.mxu0 0
      %904 = vmatpush2.bf16.msra.mxu0 0
      %905 = vmatprep.mubr.bf16.mxu0 0
      %906 = vmatmul.mubr.bf16.gmra.mxu0 %v867
      %v907 = vpop.f32.mrf.mxu0
      %v908 = vadd.f32 0.0, %v907
      %v909 = vpop.f32.mrf.mxu0
      %v910 = vpop.f32.mrf.mxu0
      %v911 = vpop.f32.mrf.mxu0
      %912 = vdwg.mxu0
      %913 = vrot.lane.b32.xlu0 %v800, 120
      %v914 = vpop.permute.xlu0 %913
      %915 = vrot.lane.b32.xlu0 %v800, 88
      %v916 = vpop.permute.xlu0 %915
      %v918 = vsel %vm804, %v914, 0
      %v921 = vsel %vm804, %v916, 0
      %923 = vmatprep.subr.bf16.mxu0 0
      %924 = vmatpush1.bf16.xpose.msra.mxu0 0
      %925 = vmatprep.subr.bf16.mxu0 0
      %926 = vmatpush1.bf16.xpose.msra.mxu0 0
      %927 = vmatprep.subr.bf16.mxu0 0
      %928 = vmatpush1.bf16.xpose.msra.mxu0 0
      %929 = vmatprep.subr.bf16.mxu0 0
      %930 = vmatpush1.bf16.xpose.msra.mxu0 0
      %931 = vmatprep.subr.bf16.mxu0 0
      %932 = vmatpush1.bf16.xpose.msra.mxu0 0
      %933 = vmatprep.subr.bf16.mxu0 0
      %934 = vmatpush1.bf16.xpose.msra.mxu0 0
      %935 = vmatprep.subr.bf16.mxu0 0
      %936 = vmatpush1.bf16.xpose.msra.mxu0 0
      %937 = vmatprep.subr.bf16.mxu0 0
      %938 = vmatpush1.bf16.xpose.msra.mxu0 %v921
      %939 = vmatprep.subr.bf16.mxu0 0
      %940 = vmatpush2.bf16.xpose.msra.mxu0 0
      %941 = vmatprep.subr.bf16.mxu0 0
      %942 = vmatpush2.bf16.xpose.msra.mxu0 0
      %943 = vmatprep.subr.bf16.mxu0 0
      %944 = vmatpush2.bf16.xpose.msra.mxu0 0
      %945 = vmatprep.subr.bf16.mxu0 0
      %946 = vmatpush2.bf16.xpose.msra.mxu0 0
      %947 = vmatprep.subr.bf16.mxu0 0
      %948 = vmatpush2.bf16.xpose.msra.mxu0 0
      %949 = vmatprep.subr.bf16.mxu0 0
      %950 = vmatpush2.bf16.xpose.msra.mxu0 0
      %951 = vmatprep.subr.bf16.mxu0 0
      %952 = vmatpush2.bf16.xpose.msra.mxu0 0
      %953 = vmatprep.subr.bf16.mxu0 0
      %954 = vmatpush2.bf16.xpose.msra.mxu0 0
      %955 = vmatprep.mubr.bf16.mxu0 0
      %956 = vmatmul.mubr.bf16.gmra.mxu0 %v918
      %v957 = vpop.f32.mrf.mxu0
      %v958 = vadd.f32 0.0, %v957
      %v959 = vpop.f32.mrf.mxu0
      %v960 = vpop.f32.mrf.mxu0
      %v961 = vpop.f32.mrf.mxu0
      %962 = vdwg.mxu0
      %v963 = vmul.f32 %v958, 0.35355338
      %v964 = vsel %vm804, %v963, -inf
      %965 = vmax.xlane.f32.xlu0 %v964
      %v966 = vpop.xlane.xlu0 %965
      %v967 = vsub.f32 %v963, %v966
      %v968 = vmul.f32 %v967, 1.442695
      %v969 = vpow.pop %v968
      %v970 = vsel %vm804, %v969, 0.0
      %971 = vadd.xlane.f32.xlu0 %v970
      %v972 = vpop.xlane.xlu0 %971
      %v973 = vrcp.pop %v972
      %v974 = vmul.f32 %v969, %v973
      %v975 = vpack.c.bf16 %v974, %v974
      %976 = vrot.lane.b32.xlu0 %v800, 56
      %v977 = vpop.permute.xlu0 %976
      %v979 = vsel %vm804, %v975, 0
      %v982 = vsel %vm869, %v977, 0
      %984 = vmatprep.subr.bf16.mxu0 0
      %985 = vmatpush1.bf16.msra.mxu0 0
      %986 = vmatprep.subr.bf16.mxu0 0
      %987 = vmatpush1.bf16.msra.mxu0 0
      %988 = vmatprep.subr.bf16.mxu0 0
      %989 = vmatpush1.bf16.msra.mxu0 0
      %990 = vmatprep.subr.bf16.mxu0 0
      %991 = vmatpush1.bf16.msra.mxu0 0
      %992 = vmatprep.subr.bf16.mxu0 0
      %993 = vmatpush1.bf16.msra.mxu0 0
      %994 = vmatprep.subr.bf16.mxu0 0
      %995 = vmatpush1.bf16.msra.mxu0 0
      %996 = vmatprep.subr.bf16.mxu0 0
      %997 = vmatpush1.bf16.msra.mxu0 0
      %998 = vmatprep.subr.bf16.mxu0 0
      %999 = vmatpush1.bf16.msra.mxu0 %v982
      %1000 = vmatprep.subr.bf16.mxu0 0
      %1001 = vmatpush2.bf16.msra.mxu0 0
      %1002 = vmatprep.subr.bf16.mxu0 0
      %1003 = vmatpush2.bf16.msra.mxu0 0
      %1004 = vmatprep.subr.bf16.mxu0 0
      %1005 = vmatpush2.bf16.msra.mxu0 0
      %1006 = vmatprep.subr.bf16.mxu0 0
      %1007 = vmatpush2.bf16.msra.mxu0 0
      %1008 = vmatprep.subr.bf16.mxu0 0
      %1009 = vmatpush2.bf16.msra.mxu0 0
      %1010 = vmatprep.subr.bf16.mxu0 0
      %1011 = vmatpush2.bf16.msra.mxu0 0
      %1012 = vmatprep.subr.bf16.mxu0 0
      %1013 = vmatpush2.bf16.msra.mxu0 0
      %1014 = vmatprep.subr.bf16.mxu0 0
      %1015 = vmatpush2.bf16.msra.mxu0 0
      %1016 = vmatprep.mubr.bf16.mxu0 0
      %1017 = vmatmul.mubr.bf16.gmra.mxu0 %v979
      %v1018 = vpop.f32.mrf.mxu0
      %v1019 = vadd.f32 0.0, %v1018
      %v1020 = vpop.f32.mrf.mxu0
      %v1021 = vpop.f32.mrf.mxu0
      %v1022 = vpop.f32.mrf.mxu0
      %1023 = vdwg.mxu0
      %1024 = vrot.lane.b32.xlu0 %v800, 112
      %v1025 = vpop.permute.xlu0 %1024
      %1026 = vrot.lane.b32.xlu0 %v800, 80
      %v1027 = vpop.permute.xlu0 %1026
      %v1029 = vsel %vm804, %v1025, 0
      %v1032 = vsel %vm804, %v1027, 0
      %1034 = vmatprep.subr.bf16.mxu0 0
      %1035 = vmatpush1.bf16.xpose.msra.mxu0 0
      %1036 = vmatprep.subr.bf16.mxu0 0
      %1037 = vmatpush1.bf16.xpose.msra.mxu0 0
      %1038 = vmatprep.subr.bf16.mxu0 0
      %1039 = vmatpush1.bf16.xpose.msra.mxu0 0
      %1040 = vmatprep.subr.bf16.mxu0 0
      %1041 = vmatpush1.bf16.xpose.msra.mxu0 0
      %1042 = vmatprep.subr.bf16.mxu0 0
      %1043 = vmatpush1.bf16.xpose.msra.mxu0 0
      %1044 = vmatprep.subr.bf16.mxu0 0
      %1045 = vmatpush1.bf16.xpose.msra.mxu0 0
      %1046 = vmatprep.subr.bf16.mxu0 0
      %1047 = vmatpush1.bf16.xpose.msra.mxu0 0
      %1048 = vmatprep.subr.bf16.mxu0 0
      %1049 = vmatpush1.bf16.xpose.msra.mxu0 %v1032
      %1050 = vmatprep.subr.bf16.mxu0 0
      %1051 = vmatpush2.bf16.xpose.msra.mxu0 0
      %1052 = vmatprep.subr.bf16.mxu0 0
      %1053 = vmatpush2.bf16.xpose.msra.mxu0 0
      %1054 = vmatprep.subr.bf16.mxu0 0
      %1055 = vmatpush2.bf16.xpose.msra.mxu0 0
      %1056 = vmatprep.subr.bf16.mxu0 0
      %1057 = vmatpush2.bf16.xpose.msra.mxu0 0
      %1058 = vmatprep.subr.bf16.mxu0 0
      %1059 = vmatpush2.bf16.xpose.msra.mxu0 0
      %1060 = vmatprep.subr.bf16.mxu0 0
      %1061 = vmatpush2.bf16.xpose.msra.mxu0 0
      %1062 = vmatprep.subr.bf16.mxu0 0
      %1063 = vmatpush2.bf16.xpose.msra.mxu0 0
      %1064 = vmatprep.subr.bf16.mxu0 0
      %1065 = vmatpush2.bf16.xpose.msra.mxu0 0
      %1066 = vmatprep.mubr.bf16.mxu0 0
      %1067 = vmatmul.mubr.bf16.gmra.mxu0 %v1029
      %v1068 = vpop.f32.mrf.mxu0
      %v1069 = vadd.f32 0.0, %v1068
      %v1070 = vpop.f32.mrf.mxu0
      %v1071 = vpop.f32.mrf.mxu0
      %v1072 = vpop.f32.mrf.mxu0
      %1073 = vdwg.mxu0
      %v1074 = vmul.f32 %v1069, 0.35355338
      %v1075 = vsel %vm804, %v1074, -inf
      %1076 = vmax.xlane.f32.xlu0 %v1075
      %v1077 = vpop.xlane.xlu0 %1076
      %v1078 = vsub.f32 %v1074, %v1077
      %v1079 = vmul.f32 %v1078, 1.442695
      %v1080 = vpow.pop %v1079
      %v1081 = vsel %vm804, %v1080, 0.0
      %1082 = vadd.xlane.f32.xlu0 %v1081
      %v1083 = vpop.xlane.xlu0 %1082
      %v1084 = vrcp.pop %v1083
      %v1085 = vmul.f32 %v1080, %v1084
      %v1086 = vpack.c.bf16 %v1085, %v1085
      %1087 = vrot.lane.b32.xlu0 %v800, 48
      %v1088 = vpop.permute.xlu0 %1087
      %v1090 = vsel %vm804, %v1086, 0
      %v1093 = vsel %vm869, %v1088, 0
      %1095 = vmatprep.subr.bf16.mxu0 0
      %1096 = vmatpush1.bf16.msra.mxu0 0
      %1097 = vmatprep.subr.bf16.mxu0 0
      %1098 = vmatpush1.bf16.msra.mxu0 0
      %1099 = vmatprep.subr.bf16.mxu0 0
      %1100 = vmatpush1.bf16.msra.mxu0 0
      %1101 = vmatprep.subr.bf16.mxu0 0
      %1102 = vmatpush1.bf16.msra.mxu0 0
      %1103 = vmatprep.subr.bf16.mxu0 0
      %1104 = vmatpush1.bf16.msra.mxu0 0
      %1105 = vmatprep.subr.bf16.mxu0 0
      %1106 = vmatpush1.bf16.msra.mxu0 0
      %1107 = vmatprep.subr.bf16.mxu0 0
      %1108 = vmatpush1.bf16.msra.mxu0 0
      %1109 = vmatprep.subr.bf16.mxu0 0
      %1110 = vmatpush1.bf16.msra.mxu0 %v1093
      %1111 = vmatprep.subr.bf16.mxu0 0
      %1112 = vmatpush2.bf16.msra.mxu0 0
      %1113 = vmatprep.subr.bf16.mxu0 0
      %1114 = vmatpush2.bf16.msra.mxu0 0
      %1115 = vmatprep.subr.bf16.mxu0 0
      %1116 = vmatpush2.bf16.msra.mxu0 0
      %1117 = vmatprep.subr.bf16.mxu0 0
      %1118 = vmatpush2.bf16.msra.mxu0 0
      %1119 = vmatprep.subr.bf16.mxu0 0
      %1120 = vmatpush2.bf16.msra.mxu0 0
      %1121 = vmatprep.subr.bf16.mxu0 0
      %1122 = vmatpush2.bf16.msra.mxu0 0
      %1123 = vmatprep.subr.bf16.mxu0 0
      %1124 = vmatpush2.bf16.msra.mxu0 0
      %1125 = vmatprep.subr.bf16.mxu0 0
      %1126 = vmatpush2.bf16.msra.mxu0 0
      %1127 = vmatprep.mubr.bf16.mxu0 0
      %1128 = vmatmul.mubr.bf16.gmra.mxu0 %v1090
      %v1129 = vpop.f32.mrf.mxu0
      %v1130 = vadd.f32 0.0, %v1129
      %v1131 = vpop.f32.mrf.mxu0
      %v1132 = vpop.f32.mrf.mxu0
      %v1133 = vpop.f32.mrf.mxu0
      %1134 = vdwg.mxu0
      %1135 = vrot.lane.b32.xlu0 %v800, 104
      %v1136 = vpop.permute.xlu0 %1135
      %1137 = vrot.lane.b32.xlu0 %v800, 72
      %v1138 = vpop.permute.xlu0 %1137
      %v1140 = vsel %vm804, %v1136, 0
      %v1143 = vsel %vm804, %v1138, 0
      %1145 = vmatprep.subr.bf16.mxu0 0
      %1146 = vmatpush1.bf16.xpose.msra.mxu0 0
      %1147 = vmatprep.subr.bf16.mxu0 0
      %1148 = vmatpush1.bf16.xpose.msra.mxu0 0
      %1149 = vmatprep.subr.bf16.mxu0 0
      %1150 = vmatpush1.bf16.xpose.msra.mxu0 0
      %1151 = vmatprep.subr.bf16.mxu0 0
      %1152 = vmatpush1.bf16.xpose.msra.mxu0 0
      %1153 = vmatprep.subr.bf16.mxu0 0
      %1154 = vmatpush1.bf16.xpose.msra.mxu0 0
      %1155 = vmatprep.subr.bf16.mxu0 0
      %1156 = vmatpush1.bf16.xpose.msra.mxu0 0
      %1157 = vmatprep.subr.bf16.mxu0 0
      %1158 = vmatpush1.bf16.xpose.msra.mxu0 0
      %1159 = vmatprep.subr.bf16.mxu0 0
      %1160 = vmatpush1.bf16.xpose.msra.mxu0 %v1143
      %1161 = vmatprep.subr.bf16.mxu0 0
      %1162 = vmatpush2.bf16.xpose.msra.mxu0 0
      %1163 = vmatprep.subr.bf16.mxu0 0
      %1164 = vmatpush2.bf16.xpose.msra.mxu0 0
      %1165 = vmatprep.subr.bf16.mxu0 0
      %1166 = vmatpush2.bf16.xpose.msra.mxu0 0
      %1167 = vmatprep.subr.bf16.mxu0 0
      %1168 = vmatpush2.bf16.xpose.msra.mxu0 0
      %1169 = vmatprep.subr.bf16.mxu0 0
      %1170 = vmatpush2.bf16.xpose.msra.mxu0 0
      %1171 = vmatprep.subr.bf16.mxu0 0
      %1172 = vmatpush2.bf16.xpose.msra.mxu0 0
      %1173 = vmatprep.subr.bf16.mxu0 0
      %1174 = vmatpush2.bf16.xpose.msra.mxu0 0
      %1175 = vmatprep.subr.bf16.mxu0 0
      %1176 = vmatpush2.bf16.xpose.msra.mxu0 0
      %1177 = vmatprep.mubr.bf16.mxu0 0
      %1178 = vmatmul.mubr.bf16.gmra.mxu0 %v1140
      %v1179 = vpop.f32.mrf.mxu0
      %v1180 = vadd.f32 0.0, %v1179
      %v1181 = vpop.f32.mrf.mxu0
      %v1182 = vpop.f32.mrf.mxu0
      %v1183 = vpop.f32.mrf.mxu0
      %1184 = vdwg.mxu0
      %v1185 = vmul.f32 %v1180, 0.35355338
      %v1186 = vsel %vm804, %v1185, -inf
      %1187 = vmax.xlane.f32.xlu0 %v1186
      %v1188 = vpop.xlane.xlu0 %1187
      %v1189 = vsub.f32 %v1185, %v1188
      %v1190 = vmul.f32 %v1189, 1.442695
      %v1191 = vpow.pop %v1190
      %v1192 = vsel %vm804, %v1191, 0.0
      %1193 = vadd.xlane.f32.xlu0 %v1192
      %v1194 = vpop.xlane.xlu0 %1193
      %v1195 = vrcp.pop %v1194
      %v1196 = vmul.f32 %v1191, %v1195
      %v1197 = vpack.c.bf16 %v1196, %v1196
      %1198 = vrot.lane.b32.xlu0 %v800, 40
      %v1199 = vpop.permute.xlu0 %1198
      %v1201 = vsel %vm804, %v1197, 0
      %v1204 = vsel %vm869, %v1199, 0
      %1206 = vmatprep.subr.bf16.mxu0 0
      %1207 = vmatpush1.bf16.msra.mxu0 0
      %1208 = vmatprep.subr.bf16.mxu0 0
      %1209 = vmatpush1.bf16.msra.mxu0 0
      %1210 = vmatprep.subr.bf16.mxu0 0
      %1211 = vmatpush1.bf16.msra.mxu0 0
      %1212 = vmatprep.subr.bf16.mxu0 0
      %1213 = vmatpush1.bf16.msra.mxu0 0
      %1214 = vmatprep.subr.bf16.mxu0 0
      %1215 = vmatpush1.bf16.msra.mxu0 0
      %1216 = vmatprep.subr.bf16.mxu0 0
      %1217 = vmatpush1.bf16.msra.mxu0 0
      %1218 = vmatprep.subr.bf16.mxu0 0
      %1219 = vmatpush1.bf16.msra.mxu0 0
      %1220 = vmatprep.subr.bf16.mxu0 0
      %1221 = vmatpush1.bf16.msra.mxu0 %v1204
      %1222 = vmatprep.subr.bf16.mxu0 0
      %1223 = vmatpush2.bf16.msra.mxu0 0
      %1224 = vmatprep.subr.bf16.mxu0 0
      %1225 = vmatpush2.bf16.msra.mxu0 0
      %1226 = vmatprep.subr.bf16.mxu0 0
      %1227 = vmatpush2.bf16.msra.mxu0 0
      %1228 = vmatprep.subr.bf16.mxu0 0
      %1229 = vmatpush2.bf16.msra.mxu0 0
      %1230 = vmatprep.subr.bf16.mxu0 0
      %1231 = vmatpush2.bf16.msra.mxu0 0
      %1232 = vmatprep.subr.bf16.mxu0 0
      %1233 = vmatpush2.bf16.msra.mxu0 0
      %1234 = vmatprep.subr.bf16.mxu0 0
      %1235 = vmatpush2.bf16.msra.mxu0 0
      %1236 = vmatprep.subr.bf16.mxu0 0
      %1237 = vmatpush2.bf16.msra.mxu0 0
      %1238 = vmatprep.mubr.bf16.mxu0 0
      %1239 = vmatmul.mubr.bf16.gmra.mxu0 %v1201
      %v1240 = vpop.f32.mrf.mxu0
      %v1241 = vadd.f32 0.0, %v1240
      %v1242 = vpop.f32.mrf.mxu0
      %v1243 = vpop.f32.mrf.mxu0
      %v1244 = vpop.f32.mrf.mxu0
      %1245 = vdwg.mxu0
      %1247 = vrot.lane.b32.xlu0 %v1019, 8
      %v1248 = vpop.permute.xlu0 %1247
      %1251 = vrot.lane.b32.xlu0 %v1130, 16
      %v1252 = vpop.permute.xlu0 %1251
      %1255 = vrot.lane.b32.xlu0 %v1241, 24
      %v1256 = vpop.permute.xlu0 %1255
      %v1258 = vsel %vm804, %v908, %v1248
      %vm1259 = vcmask 130048
      %v1260 = vsel %vm1259, %v1258, %v1252
      %vm1261 = vcmask 195584
      %v1262 = vsel %vm1261, %v1260, %v1256
      %v1263 = vpack.c.bf16 %v1262, %v1262
      %v1264 = vld [vmem:[%s685] sm:$0xf]
      %v1265 = vld [vmem:[%s685 + $0x4] sm:$0xf]
      %v1266 = vld [vmem:[%s685 + $0x8] sm:$0xf]
      %v1267 = vld [vmem:[%s685 + $0xc] sm:$0xf]
      %v1268 = vld [vmem:[%s688] sm:$0x1]
      %v1270 = vlaneseq
      %v1271 = vshrl.u32 %v1270, 7
      %v1272 = vsub.s32 0, %v1271
      %v1273 = vrot.slane %v1268, %v1272
      %v1279 = vunpack.c.l.b16 %v1264
      %v1280 = vunpack.c.l.b16 %v1265
      %v1281 = vunpack.c.l.b16 %v1266
      %v1282 = vunpack.c.l.b16 %v1267
      %v1283 = vpack.c.b16 %v1280, %v1279
      %v1284 = vpack.c.b16 %v1282, %v1281
      %v1288 = vsel %vm756, %v1263, 0
      %1290 = vmatprep.subr.bf16.mxu0 0
      %1291 = vmatpush1.bf16.msra.mxu0 0
      %1292 = vmatprep.subr.bf16.mxu0 0
      %1293 = vmatpush1.bf16.msra.mxu0 0
      %1294 = vmatprep.subr.bf16.mxu0 0
      %1295 = vmatpush1.bf16.msra.mxu0 0
      %1296 = vmatprep.subr.bf16.mxu0 0
      %1297 = vmatpush1.bf16.msra.mxu0 0
      %1298 = vmatprep.subr.bf16.mxu0 0
      %1299 = vmatpush1.bf16.msra.mxu0 0
      %1300 = vmatprep.subr.bf16.mxu0 0
      %1301 = vmatpush1.bf16.msra.mxu0 0
      %1302 = vmatprep.subr.bf16.mxu0 0
      %1303 = vmatpush1.bf16.msra.mxu0 %v1284
      %1304 = vmatprep.subr.bf16.mxu0 0
      %1305 = vmatpush1.bf16.msra.mxu0 %v1283
      %1306 = vmatprep.subr.bf16.mxu0 0
      %1307 = vmatpush2.bf16.msra.mxu0 0
      %1308 = vmatprep.subr.bf16.mxu0 0
      %1309 = vmatpush2.bf16.msra.mxu0 0
      %1310 = vmatprep.subr.bf16.mxu0 0
      %1311 = vmatpush2.bf16.msra.mxu0 0
      %1312 = vmatprep.subr.bf16.mxu0 0
      %1313 = vmatpush2.bf16.msra.mxu0 0
      %1314 = vmatprep.subr.bf16.mxu0 0
      %1315 = vmatpush2.bf16.msra.mxu0 0
      %1316 = vmatprep.subr.bf16.mxu0 0
      %1317 = vmatpush2.bf16.msra.mxu0 0
      %1318 = vmatprep.subr.bf16.mxu0 0
      %1319 = vmatpush2.bf16.msra.mxu0 0
      %1320 = vmatprep.subr.bf16.mxu0 0
      %1321 = vmatpush2.bf16.msra.mxu0 0
      %1322 = vmatprep.mubr.bf16.mxu0 0
      %1323 = vmatmul.mubr.bf16.gmra.mxu0 %v1288
      %v1324 = vpop.f32.mrf.mxu0
      %v1325 = vadd.f32 %v1273, %v1324
      %v1326 = vpop.f32.mrf.mxu0
      %v1327 = vpop.f32.mrf.mxu0
      %v1328 = vpop.f32.mrf.mxu0
      %1329 = vdwg.mxu0
      %v1330 = vadd.f32 %v731, %v1325
      %v1331 = vld [vmem:[%s691] sm:$0x1]
      %v1332 = vld [vmem:[%s694] sm:$0x1]
      %v1333 = vsel %vm756, %v1330, 0.0
      %1334 = vadd.xlane.f32.xlu0 %v1333
      %v1335 = vpop.xlane.xlu0 %1334
      %v1336 = vrcp.pop 32.0
      %v1337 = vmul.f32 %v1335, %v1336
      %v1338 = vsub.f32 %v1330, %v1337
      %v1339 = vmul.f32 %v1338, %v1338
      %v1340 = vsel %vm756, %v1339, 0.0
      %1341 = vadd.xlane.f32.xlu0 %v1340
      %v1342 = vpop.xlane.xlu0 %1341
      %v1343 = vmul.f32 %v1342, %v1336
      %v1344 = vadd.f32 %v1343, 1e-05
      %v1345 = vrsqrt.pop %v1344
      %v1346 = vmul.f32 %v1338, %v1345
      %v1348 = vlaneseq
      %v1349 = vshrl.u32 %v1348, 7
      %v1350 = vsub.s32 0, %v1349
      %v1351 = vrot.slane %v1331, %v1350
      %v1353 = vmul.f32 %v1346, %v1351
      %v1355 = vlaneseq
      %v1356 = vshrl.u32 %v1355, 7
      %v1357 = vsub.s32 0, %v1356
      %v1358 = vrot.slane %v1332, %v1357
      %v1360 = vadd.f32 %v1353, %v1358
      %v1361 = vpack.c.bf16 %v1360, %v1360
      %v1362 = vld [vmem:[%s699] sm:$0xf]
      %v1363 = vld [vmem:[%s699 + $0x4] sm:$0xf]
      %v1364 = vld [vmem:[%s699 + $0x8] sm:$0xf]
      %v1365 = vld [vmem:[%s699 + $0xc] sm:$0xf]
      %v1366 = vld [vmem:[%s702] sm:$0x1]
      %v1368 = vlaneseq
      %v1369 = vshrl.u32 %v1368, 7
      %v1370 = vsub.s32 0, %v1369
      %v1371 = vrot.slane %v1366, %v1370
      %v1377 = vunpack.c.l.b16 %v1362
      %v1378 = vunpack.c.l.b16 %v1363
      %v1379 = vunpack.c.l.b16 %v1364
      %v1380 = vunpack.c.l.b16 %v1365
      %v1381 = vpack.c.b16 %v1378, %v1377
      %v1382 = vpack.c.b16 %v1380, %v1379
      %v1386 = vsel %vm756, %v1361, 0
      %1388 = vmatprep.subr.bf16.mxu0 0
      %1389 = vmatpush1.bf16.msra.mxu0 0
      %1390 = vmatprep.subr.bf16.mxu0 0
      %1391 = vmatpush1.bf16.msra.mxu0 0
      %1392 = vmatprep.subr.bf16.mxu0 0
      %1393 = vmatpush1.bf16.msra.mxu0 0
      %1394 = vmatprep.subr.bf16.mxu0 0
      %1395 = vmatpush1.bf16.msra.mxu0 0
      %1396 = vmatprep.subr.bf16.mxu0 0
      %1397 = vmatpush1.bf16.msra.mxu0 0
      %1398 = vmatprep.subr.bf16.mxu0 0
      %1399 = vmatpush1.bf16.msra.mxu0 0
      %1400 = vmatprep.subr.bf16.mxu0 0
      %1401 = vmatpush1.bf16.msra.mxu0 %v1382
      %1402 = vmatprep.subr.bf16.mxu0 0
      %1403 = vmatpush1.bf16.msra.mxu0 %v1381
      %1404 = vmatprep.subr.bf16.mxu0 0
      %1405 = vmatpush2.bf16.msra.mxu0 0
      %1406 = vmatprep.subr.bf16.mxu0 0
      %1407 = vmatpush2.bf16.msra.mxu0 0
      %1408 = vmatprep.subr.bf16.mxu0 0
      %1409 = vmatpush2.bf16.msra.mxu0 0
      %1410 = vmatprep.subr.bf16.mxu0 0
      %1411 = vmatpush2.bf16.msra.mxu0 0
      %1412 = vmatprep.subr.bf16.mxu0 0
      %1413 = vmatpush2.bf16.msra.mxu0 0
      %1414 = vmatprep.subr.bf16.mxu0 0
      %1415 = vmatpush2.bf16.msra.mxu0 0
      %1416 = vmatprep.subr.bf16.mxu0 0
      %1417 = vmatpush2.bf16.msra.mxu0 0
      %1418 = vmatprep.subr.bf16.mxu0 0
      %1419 = vmatpush2.bf16.msra.mxu0 0
      %1420 = vmatprep.mubr.bf16.mxu0 0
      %1421 = vmatmul.mubr.bf16.gmra.mxu0 %v1386
      %v1422 = vpop.f32.mrf.mxu0
      %v1423 = vadd.f32 %v1371, %v1422
      %v1424 = vpop.f32.mrf.mxu0
      %v1425 = vpop.f32.mrf.mxu0
      %v1426 = vpop.f32.mrf.mxu0
      %1427 = vdwg.mxu0
      %v1428 = vmax.f32 %v1423, 0.0
      %v1429 = vpack.c.bf16 %v1428, %v1428
      %v1430 = vld [vmem:[%s707] sm:$0xf]
      %v1431 = vld [vmem:[%s707 + $0x4] sm:$0xf]
      %v1432 = vld [vmem:[%s707 + $0x8] sm:$0xf]
      %v1433 = vld [vmem:[%s707 + $0xc] sm:$0xf]
      %v1434 = vld [vmem:[%s707 + $0x10] sm:$0xf]
      %v1435 = vld [vmem:[%s707 + $0x14] sm:$0xf]
      %v1436 = vld [vmem:[%s707 + $0x18] sm:$0xf]
      %v1437 = vld [vmem:[%s707 + $0x1c] sm:$0xf]
      %v1438 = vld [vmem:[%s707 + $0x20] sm:$0xf]
      %v1439 = vld [vmem:[%s707 + $0x24] sm:$0xf]
      %v1440 = vld [vmem:[%s707 + $0x28] sm:$0xf]
      %v1441 = vld [vmem:[%s707 + $0x2c] sm:$0xf]
      %v1442 = vld [vmem:[%s707 + $0x30] sm:$0xf]
      %v1443 = vld [vmem:[%s707 + $0x34] sm:$0xf]
      %v1444 = vld [vmem:[%s707 + $0x38] sm:$0xf]
      %v1445 = vld [vmem:[%s707 + $0x3c] sm:$0xf]
      %v1446 = vld [vmem:[%s710] sm:$0x1]
      %v1448 = vlaneseq
      %v1449 = vshrl.u32 %v1448, 7
      %v1450 = vsub.s32 0, %v1449
      %v1451 = vrot.slane %v1446, %v1450
      %v1469 = vunpack.c.l.b16 %v1430
      %v1470 = vunpack.c.l.b16 %v1431
      %v1471 = vunpack.c.l.b16 %v1432
      %v1472 = vunpack.c.l.b16 %v1433
      %v1473 = vunpack.c.l.b16 %v1434
      %v1474 = vunpack.c.l.b16 %v1435
      %v1475 = vunpack.c.l.b16 %v1436
      %v1476 = vunpack.c.l.b16 %v1437
      %v1477 = vunpack.c.l.b16 %v1438
      %v1478 = vunpack.c.l.b16 %v1439
      %v1479 = vunpack.c.l.b16 %v1440
      %v1480 = vunpack.c.l.b16 %v1441
      %v1481 = vunpack.c.l.b16 %v1442
      %v1482 = vunpack.c.l.b16 %v1443
      %v1483 = vunpack.c.l.b16 %v1444
      %v1484 = vunpack.c.l.b16 %v1445
      %v1485 = vpack.c.b16 %v1470, %v1469
      %v1486 = vpack.c.b16 %v1472, %v1471
      %v1487 = vpack.c.b16 %v1474, %v1473
      %v1488 = vpack.c.b16 %v1476, %v1475
      %v1489 = vpack.c.b16 %v1478, %v1477
      %v1490 = vpack.c.b16 %v1480, %v1479
      %v1491 = vpack.c.b16 %v1482, %v1481
      %v1492 = vpack.c.b16 %v1484, %v1483
      %1501 = vmatprep.subr.bf16.mxu0 0
      %1502 = vmatpush1.bf16.msra.mxu0 %v1492
      %1503 = vmatprep.subr.bf16.mxu0 0
      %1504 = vmatpush1.bf16.msra.mxu0 %v1491
      %1505 = vmatprep.subr.bf16.mxu0 0
      %1506 = vmatpush1.bf16.msra.mxu0 %v1490
      %1507 = vmatprep.subr.bf16.mxu0 0
      %1508 = vmatpush1.bf16.msra.mxu0 %v1489
      %1509 = vmatprep.subr.bf16.mxu0 0
      %1510 = vmatpush1.bf16.msra.mxu0 %v1488
      %1511 = vmatprep.subr.bf16.mxu0 0
      %1512 = vmatpush1.bf16.msra.mxu0 %v1487
      %1513 = vmatprep.subr.bf16.mxu0 0
      %1514 = vmatpush1.bf16.msra.mxu0 %v1486
      %1515 = vmatprep.subr.bf16.mxu0 0
      %1516 = vmatpush1.bf16.msra.mxu0 %v1485
      %1517 = vmatprep.subr.bf16.mxu0 0
      %1518 = vmatpush2.bf16.msra.mxu0 0
      %1519 = vmatprep.subr.bf16.mxu0 0
      %1520 = vmatpush2.bf16.msra.mxu0 0
      %1521 = vmatprep.subr.bf16.mxu0 0
      %1522 = vmatpush2.bf16.msra.mxu0 0
      %1523 = vmatprep.subr.bf16.mxu0 0
      %1524 = vmatpush2.bf16.msra.mxu0 0
      %1525 = vmatprep.subr.bf16.mxu0 0
      %1526 = vmatpush2.bf16.msra.mxu0 0
      %1527 = vmatprep.subr.bf16.mxu0 0
      %1528 = vmatpush2.bf16.msra.mxu0 0
      %1529 = vmatprep.subr.bf16.mxu0 0
      %1530 = vmatpush2.bf16.msra.mxu0 0
      %1531 = vmatprep.subr.bf16.mxu0 0
      %1532 = vmatpush2.bf16.msra.mxu0 0
      %1533 = vmatprep.mubr.bf16.mxu0 0
      %1534 = vmatmul.mubr.bf16.gmra.mxu0 %v1429
      %v1535 = vpop.f32.mrf.mxu0
      %v1536 = vadd.f32 %v1451, %v1535
      %v1537 = vpop.f32.mrf.mxu0
      %v1538 = vpop.f32.mrf.mxu0
      %v1539 = vpop.f32.mrf.mxu0
      %1540 = vdwg.mxu0
      %v1541 = vadd.f32 %v1360, %v1536
      %v1542 = vld [vmem:[%s713] sm:$0x1]
      %v1543 = vld [vmem:[%s716] sm:$0x1]
      %v1544 = vsel %vm756, %v1541, 0.0
      %1545 = vadd.xlane.f32.xlu0 %v1544
      %v1546 = vpop.xlane.xlu0 %1545
      %v1547 = vmul.f32 %v1546, %v1336
      %v1548 = vsub.f32 %v1541, %v1547
      %v1549 = vmul.f32 %v1548, %v1548
      %v1550 = vsel %vm756, %v1549, 0.0
      %1551 = vadd.xlane.f32.xlu0 %v1550
      %v1552 = vpop.xlane.xlu0 %1551
      %v1553 = vmul.f32 %v1552, %v1336
      %v1554 = vadd.f32 %v1553, 1e-05
      %v1555 = vrsqrt.pop %v1554
      %v1556 = vmul.f32 %v1548, %v1555
      %v1558 = vlaneseq
      %v1559 = vshrl.u32 %v1558, 7
      %v1560 = vsub.s32 0, %v1559
      %v1561 = vrot.slane %v1542, %v1560
      %v1563 = vmul.f32 %v1556, %v1561
      %v1565 = vlaneseq
      %v1566 = vshrl.u32 %v1565, 7
      %v1567 = vsub.s32 0, %v1566
      %v1568 = vrot.slane %v1543, %v1567
      %v1570 = vadd.f32 %v1563, %v1568
      %1571 = vst.msk [vmem:[#allocation2] sm:$0xff] %vm756, %v1570
      %p1572 = scmp.eq.s32.totalorder %s32, 1
      // Predicated region
      $region89: #{transformer_forward.1} parent=83 // pred_check
        %p1573 = pneg %p1572
      $region90: #{transformer_forward.1} parent=83 // pred_check_branch
        %1575 = sbr.rel (%p1573) target = $region92
      $region91: #{transformer_forward.1} parent=83 // pred_region
        %v1576 = vpack.c.bf16 %v1570, %v1570
        %v1577 = vld [vmem:[%s14] sm:$0xf]
        %v1578 = vld [vmem:[%s14 + $0x4] sm:$0xf]
        %v1579 = vld [vmem:[%s14 + $0x8] sm:$0xf]
        %v1580 = vld [vmem:[%s14 + $0xc] sm:$0xf]
        %v1581 = vld [vmem:[%s15] sm:$0x1]
        %v1583 = vlaneseq
        %v1584 = vshrl.u32 %v1583, 7
        %v1585 = vsub.s32 0, %v1584
        %v1586 = vrot.slane %v1581, %v1585
        %v1592 = vunpack.c.l.b16 %v1577
        %v1593 = vunpack.c.l.b16 %v1578
        %v1594 = vunpack.c.l.b16 %v1579
        %v1595 = vunpack.c.l.b16 %v1580
        %v1596 = vpack.c.b16 %v1593, %v1592
        %v1597 = vpack.c.b16 %v1595, %v1594
        %v1601 = vsel %vm756, %v1576, 0
        %1603 = vmatprep.subr.bf16.mxu0 0
        %1604 = vmatpush1.bf16.msra.mxu0 0
        %1605 = vmatprep.subr.bf16.mxu0 0
        %1606 = vmatpush1.bf16.msra.mxu0 0
        %1607 = vmatprep.subr.bf16.mxu0 0
        %1608 = vmatpush1.bf16.msra.mxu0 0
        %1609 = vmatprep.subr.bf16.mxu0 0
        %1610 = vmatpush1.bf16.msra.mxu0 0
        %1611 = vmatprep.subr.bf16.mxu0 0
        %1612 = vmatpush1.bf16.msra.mxu0 0
        %1613 = vmatprep.subr.bf16.mxu0 0
        %1614 = vmatpush1.bf16.msra.mxu0 0
        %1615 = vmatprep.subr.bf16.mxu0 0
        %1616 = vmatpush1.bf16.msra.mxu0 %v1597
        %1617 = vmatprep.subr.bf16.mxu0 0
        %1618 = vmatpush1.bf16.msra.mxu0 %v1596
        %1619 = vmatprep.subr.bf16.mxu0 0
        %1620 = vmatpush2.bf16.msra.mxu0 0
        %1621 = vmatprep.subr.bf16.mxu0 0
        %1622 = vmatpush2.bf16.msra.mxu0 0
        %1623 = vmatprep.subr.bf16.mxu0 0
        %1624 = vmatpush2.bf16.msra.mxu0 0
        %1625 = vmatprep.subr.bf16.mxu0 0
        %1626 = vmatpush2.bf16.msra.mxu0 0
        %1627 = vmatprep.subr.bf16.mxu0 0
        %1628 = vmatpush2.bf16.msra.mxu0 0
        %1629 = vmatprep.subr.bf16.mxu0 0
        %1630 = vmatpush2.bf16.msra.mxu0 0
        %1631 = vmatprep.subr.bf16.mxu0 0
        %1632 = vmatpush2.bf16.msra.mxu0 0
        %1633 = vmatprep.subr.bf16.mxu0 0
        %1634 = vmatpush2.bf16.msra.mxu0 0
        %1635 = vmatprep.mubr.bf16.mxu0 0
        %1636 = vmatmul.mubr.bf16.gmra.mxu0 %v1601
        %v1637 = vpop.f32.mrf.mxu0
        %v1638 = vadd.f32 %v1586, %v1637
        %v1639 = vpop.f32.mrf.mxu0
        %v1640 = vpop.f32.mrf.mxu0
        %v1641 = vpop.f32.mrf.mxu0
        %1642 = vdwg.mxu0
        %1643 = vst [vmem:[%s720] sm:$0xff] %v1638
      $region92: #{transformer_forward.1} parent=83 // pred_fallthru
        _
      %p1644 = scmp.lt.s32.totalorder %s31, 1
      %s1645 = scalar_select %p1644, %s31, 1
      %s1646 = smul.addr %s1645, 8
      %s1647 = scalar_lea.vmem %s16, %s1646
      // Predicated region
      $region93: #{transformer_forward.1} parent=83 // pred_check
        %p1648 = pneg %p458
      $region94: #{transformer_forward.1} parent=83 // pred_check_branch
        %1650 = sbr.rel (%p1648) target = $region96
      $region95: #{transformer_forward.1} parent=83 // pred_region
        _
      $region96: #{transformer_forward.1} parent=83 // pred_fallthru
        _
    $region84: #{transformer_forward.1} parent=5 // pred_fallthru
      _
    %p1651 = scmp.le.s32.totalorder 2, %s22
    // Predicated region
    $region97: #{transformer_forward.1} parent=5 // pred_check
      %p1652 = pneg %p1651
    $region98: #{transformer_forward.1} parent=5 // pred_check_branch
      %1654 = sbr.rel (%p1652) target = $region100
    $region99: #{transformer_forward.1} parent=5 // pred_region
      %s1655 = ssub.s32 %s22, 2
      // Predicated region
      $region101: #{transformer_forward.1} parent=99 // pred_check
        %p1656 = pneg %p464
      $region102: #{transformer_forward.1} parent=99 // pred_check_branch
        %1658 = sbr.rel (%p1656) target = $region104
      $region103: #{transformer_forward.1} parent=99 // pred_region
        %p1659 = scmp.lt.s32.totalorder %s33, 1
        %s1660 = scalar_select %p1659, %s33, 1
        %s1661 = smul.addr %s1660, 8
        %s1662 = scalar_lea.vmem %s16, %s1661
      $region104: #{transformer_forward.1} parent=99 // pred_fallthru
        _
    $region100: #{transformer_forward.1} parent=5 // pred_fallthru
      _
  $region6: #{transformer_forward.1} parent=0 // loop_footer
    %s26 = sadd.s32 1, %s22
  $region7: #{transformer_forward.1} parent=0 // loop_footer_branch
    %21 = sbr.rel target = $region3
  $region8: #{transformer_forward.1} parent=0 // loop_exit
    _

</llo_original>
